<compile_context>
chip_gen: v5e
topology: v5e:2x2
jax: 0.10.0
libtpu: 0.0.40
codegen_flags: <defaults>
</compile_context>

<pallas_src>
import jax
import jax.numpy as jnp
from jax.experimental import pallas as pl
from jax.experimental.pallas import tpu as pltpu


NEG_BIG = -1e30  # finite "minus infinity": no NaN even on heavily masked rows


def _pick_q_tile(T):
    """Query-tile length: full T when small, else a 128/256/512 divisor."""
    if T <= 256:
        return T
    for cand in (512, 256, 128):
        if T % cand == 0:
            return cand
    return T


def _vmem_limit_bytes():
    """Generation-aware VMEM cap: ~3/4 of physical, at most 100 MiB."""
    phys = 128 * 1024 * 1024
    try:
        phys = int(pltpu.get_tpu_info().vmem_capacity_bytes)
    except Exception:
        pass
    return int(max(32 * 1024 * 1024, min(100 * 1024 * 1024, (phys * 3) // 4)))


def make_block_kernel(T, C, H, Tq, exact_softmax=False):
    hs = C // H
    eps = 1e-5  # PyTorch nn.LayerNorm default

    def layernorm(x, gamma, beta):                      # f32 math
        mu = jnp.mean(x, axis=-1, keepdims=True)
        var = jnp.mean(jnp.square(x - mu), axis=-1, keepdims=True)
        return (x - mu) * jax.lax.rsqrt(var + eps) * gamma + beta

    def kernel(xq_ref, xfull_ref,
               wq_ref, wkv_ref, wo3_ref, w1_ref, w2_ref, b1_ref, pv_ref,
               o_ref,
               k_scr, v_scr):
        qi = pl.program_id(1)

        pv = pv_ref[...]                                 # (8, C) packed params
        g1, be1 = pv[0:1, :], pv[1:2, :]
        g2, be2 = pv[2:3, :], pv[3:4, :]
        bo, b2 = pv[4:5, :], pv[5:6, :]

        # ---- K/V for the whole sequence: once per batch element, kept in
        # VMEM scratch across the query-tile axis ----
        @pl.when(qi == 0)
        def _():
            h1_full = layernorm(xfull_ref[0], g1, be1)                  # (T, C)
            kv = jnp.dot(h1_full.astype(jnp.bfloat16), wkv_ref[...],
                         preferred_element_type=jnp.float32)            # (T, 2C)
            k3 = kv[:, :C].reshape(T, H, hs)
            v3 = kv[:, C:].reshape(T, H, hs)
            k_scr[...] = jnp.transpose(k3, (1, 0, 2)).astype(jnp.bfloat16)
            v_scr[...] = jnp.transpose(v3, (1, 0, 2)).astype(jnp.bfloat16)

        # ---- Q for this query tile (1/sqrt(hs) pre-folded into wq) ----
        xq = xq_ref[0]                                                   # (Tq, C)
        q = jnp.dot(layernorm(xq, g1, be1).astype(jnp.bfloat16), wq_ref[...],
                    preferred_element_type=jnp.float32)                  # (Tq, C)
        qh = jnp.transpose(q.reshape(Tq, H, hs), (1, 0, 2)).astype(jnp.bfloat16)

        # ---- Causal attention over all keys (heads = leading batch dim) ----
        s = jnp.einsum('hqd,hkd->hqk', qh, k_scr[...],
                       preferred_element_type=jnp.float32)               # (H,Tq,T)
        row = jax.lax.broadcasted_iota(jnp.int32, (Tq, T), 0) + qi * Tq
        col = jax.lax.broadcasted_iota(jnp.int32, (Tq, T), 1)
        s = jnp.where((row >= col)[None, :, :], s, NEG_BIG)

        s = s - jnp.max(s, axis=-1, keepdims=True)                       # stable
        p = jnp.exp(s)
        denom = jnp.sum(p, axis=-1, keepdims=True)
        if exact_softmax:
            p = p / denom
        else:
            p = p * pl.reciprocal(denom, approx=True)

        att = jnp.einsum('hqk,hkd->hqd', p.astype(jnp.bfloat16), v_scr[...],
                         preferred_element_type=jnp.float32)             # (H,Tq,hs)

        # ---- Output projection: contract head dim directly (no transpose) ----
        sa = jnp.einsum('hqd,hdc->hqc', att.astype(jnp.bfloat16), wo3_ref[...],
                        preferred_element_type=jnp.float32).sum(axis=0) + bo
        x1 = xq + sa                                                     # residual 1

        # ---- LayerNorm 2 + feed-forward ----
        h2 = layernorm(x1, g2, be2)
        f = jnp.dot(h2.astype(jnp.bfloat16), w1_ref[...],
                    preferred_element_type=jnp.float32) + b1_ref[...]
        f = jnp.maximum(f, 0.0)                                          # ReLU
        f = jnp.dot(f.astype(jnp.bfloat16), w2_ref[...],
                    preferred_element_type=jnp.float32) + b2

        o_ref[0] = (x1 + f).astype(o_ref.dtype)                          # residual 2

    return kernel


def prepare_params(params, n_head):
    """One-time weight packing / bf16 casting (hoisted out of the call path)."""
    C = params["wq"].shape[0]
    H = n_head
    hs = C // H
    scale = float(hs) ** -0.5
    return {
        "wq": (params["wq"] * scale).astype(jnp.bfloat16),           # (C, C)
        "wkv": jnp.concatenate([params["wk"], params["wv"]],
                               axis=1).astype(jnp.bfloat16),         # (C, 2C)
        "wo3": params["wo"].reshape(H, hs, C).astype(jnp.bfloat16),  # (H, hs, C)
        "w1": params["w1"].astype(jnp.bfloat16),                     # (C, 4C)
        "w2": params["w2"].astype(jnp.bfloat16),                     # (4C, C)
        "b1": params["b1"].reshape(1, 4 * C).astype(jnp.float32),    # (1, 4C)
        "small": jnp.stack(                                          # (8, C)
            [params["g1"].reshape(C), params["be1"].reshape(C),
             params["g2"].reshape(C), params["be2"].reshape(C),
             params["bo"].reshape(C), params["b2"].reshape(C),
             jnp.zeros((C,), jnp.float32), jnp.zeros((C,), jnp.float32)],
            axis=0).astype(jnp.float32),
    }


def transformer_block(x, prep, n_head, exact_softmax=False):
    B, T, C = x.shape
    assert C % n_head == 0
    Tq = _pick_q_tile(T)
    assert T % Tq == 0
    nq = T // Tq
    hs = C // n_head

    kernel = make_block_kernel(T, C, n_head, Tq, exact_softmax)

    weights = [prep["wq"], prep["wkv"], prep["wo3"], prep["w1"], prep["w2"],
               prep["b1"], prep["small"]]

    def _const_spec(w):
        n = w.ndim
        # Grid-invariant -> single-buffered: never re-fetched, halve its VMEM.
        return pl.BlockSpec(w.shape, lambda b, q: (0,) * n,
                            pipeline_mode=pl.Buffered(1))

    in_specs = [
        pl.BlockSpec((1, Tq, C), lambda b, q: (b, q, 0)),   # x, query-tile view
        pl.BlockSpec((1, T, C), lambda b, q: (b, 0, 0)),    # x, full-seq view (K/V)
    ] + [_const_spec(w) for w in weights]
    out_spec = pl.BlockSpec((1, Tq, C), lambda b, q: (b, q, 0))

    # Advisory cost estimate for XLA's scheduler.
    weight_bytes = sum(int(w.size) * w.dtype.itemsize for w in weights)
    flops = int(B * T * C * (24 * C + 4 * T))
    transcendentals = int(B * (n_head * T * T + 2 * T))
    bytes_accessed = int(B * T * C * 4 * (2 + nq) + weight_bytes)

    return pl.pallas_call(
        kernel,
        out_shape=jax.ShapeDtypeStruct((B, T, C), jnp.float32),
        grid_spec=pltpu.PrefetchScalarGridSpec(
            num_scalar_prefetch=0,
            grid=(B, nq),
            in_specs=in_specs,
            out_specs=out_spec,
            scratch_shapes=[
                pltpu.VMEM((n_head, T, hs), jnp.bfloat16),   # K (resident)
                pltpu.VMEM((n_head, T, hs), jnp.bfloat16),   # V (resident)
            ],
        ),
        compiler_params=pltpu.CompilerParams(
            dimension_semantics=("parallel", "arbitrary"),
            vmem_limit_bytes=_vmem_limit_bytes(),
        ),
        cost_estimate=pl.CostEstimate(
            flops=flops,
            transcendentals=transcendentals,
            bytes_accessed=bytes_accessed,
        ),
    )(x, x, *weights)


def block_reference(x, params, n_head):
    """Pure-f32, exact-softmax reference (matches the PyTorch Block math)."""
    B, T, C = x.shape
    H, hs = n_head, C // n_head
    eps = 1e-5

    def ln(y, g, b):
        mu = y.mean(-1, keepdims=True)
        var = ((y - mu) ** 2).mean(-1, keepdims=True)
        return (y - mu) * jax.lax.rsqrt(var + eps) * g + b

    h1 = ln(x, params["g1"], params["be1"])
    q = h1 @ params["wq"]
    k = h1 @ params["wk"]
    v = h1 @ params["wv"]
    q = q.reshape(B, T, H, hs).transpose(0, 2, 1, 3)
    k = k.reshape(B, T, H, hs).transpose(0, 2, 1, 3)
    v = v.reshape(B, T, H, hs).transpose(0, 2, 1, 3)
    s = jnp.einsum('bhtd,bhsd->bhts', q, k) * (hs ** -0.5)
    s = jnp.where(jnp.tril(jnp.ones((T, T), bool)), s, -jnp.inf)
    p = jax.nn.softmax(s, axis=-1)
    att = jnp.einsum('bhts,bhsd->bhtd', p, v)
    sa = att.transpose(0, 2, 1, 3).reshape(B, T, C) @ params["wo"] + params["bo"]
    x = x + sa
    h2 = ln(x, params["g2"], params["be2"])
    f = jnp.maximum(h2 @ params["w1"] + params["b1"], 0.0)
    f = f @ params["w2"] + params["b2"]
    return x + f


def init_params(key, n_embd):
    C = n_embd
    ks = jax.random.split(key, 13)

    def w(k, shape, scale=0.02):
        return (scale * jax.random.normal(k, shape)).astype(jnp.float32)

    return {
        "wq": w(ks[0], (C, C)),
        "wk": w(ks[1], (C, C)),
        "wv": w(ks[2], (C, C)),
        "wo": w(ks[3], (C, C)),
        "bo": w(ks[4], (C,)),
        "w1": w(ks[5], (C, 4 * C)),
        "b1": w(ks[6], (4 * C,)),
        "w2": w(ks[7], (4 * C, C)),
        "b2": w(ks[8], (C,)),
        "g1": (1.0 + 0.1 * jax.random.normal(ks[9], (C,))).astype(jnp.float32),
        "be1": w(ks[10], (C,), 0.1),
        "g2": (1.0 + 0.1 * jax.random.normal(ks[11], (C,))).astype(jnp.float32),
        "be2": w(ks[12], (C,), 0.1),
    }


if __name__ == "__main__":
    # Module-consistent small shapes: block_size=T=8, n_embd=32, n_head=4.
    # (For benchmarking, use lane-dense sizes: C a multiple of 128.)
    B, T, C, H = 2, 8, 32, 4

    key = jax.random.PRNGKey(0)
    k_params, k_x = jax.random.split(key)
    params = init_params(k_params, C)
    x = jax.random.normal(k_x, (B, T, C), dtype=jnp.float32)

    prep = prepare_params(params, n_head=H)           # one-time weight packing
    out = transformer_block(x, prep, n_head=H)
    out = jax.block_until_ready(out)
    assert out.shape == (B, T, C) and out.dtype == jnp.float32

    ref = jax.block_until_ready(block_reference(x, params, H))
    max_err = float(jnp.max(jnp.abs(out - ref)))
    assert max_err < 2e-2, f"kernel mismatch vs f32 reference: {max_err}"

    # TODO(synk): dropout is a no-op here (eval mode); training-mode dropout
    # would need pltpu.prng_seed / prng_random_bits inside the kernel.
    print("KERNEL_OK")
</pallas_src>

<mosaic_0001>
module attributes {stable_mosaic.version = 11 : i64} {
  func.func @kernel(%arg0: i32, %arg1: i32, %arg2: memref<1x8x32xf32, #tpu.memory_space<vmem>>, %arg3: memref<1x8x32xf32, #tpu.memory_space<vmem>>, %arg4: memref<32x32xbf16, #tpu.memory_space<vmem>>, %arg5: memref<32x64xbf16, #tpu.memory_space<vmem>>, %arg6: memref<4x8x32xbf16, #tpu.memory_space<vmem>>, %arg7: memref<32x128xbf16, #tpu.memory_space<vmem>>, %arg8: memref<128x32xbf16, #tpu.memory_space<vmem>>, %arg9: memref<1x128xf32, #tpu.memory_space<vmem>>, %arg10: memref<8x32xf32, #tpu.memory_space<vmem>>, %arg11: memref<1x8x32xf32, #tpu.memory_space<vmem>>, %arg12: memref<4x8x8xbf16, #tpu.memory_space<vmem>>, %arg13: memref<4x8x8xbf16, #tpu.memory_space<vmem>>) attributes {dimension_semantics = [#tpu.dimension_semantics<parallel>, #tpu.dimension_semantics<arbitrary>], iteration_bounds = array<i64: 2, 1>, scalar_prefetch = 0 : i64, scratch_operands = 2 : i64, tpu.core_type = #tpu.core_type<tc>, window_params = [{transform_indices = @transform_0, window_bounds = array<i64: 1, 8, 32>}, {transform_indices = @transform_1, window_bounds = array<i64: 1, 8, 32>}, {pipeline_mode = #tpu.pipeline_mode<synchronous>, transform_indices = @transform_2, window_bounds = array<i64: 32, 32>}, {pipeline_mode = #tpu.pipeline_mode<synchronous>, transform_indices = @transform_3, window_bounds = array<i64: 32, 64>}, {pipeline_mode = #tpu.pipeline_mode<synchronous>, transform_indices = @transform_4, window_bounds = array<i64: 4, 8, 32>}, {pipeline_mode = #tpu.pipeline_mode<synchronous>, transform_indices = @transform_5, window_bounds = array<i64: 32, 128>}, {pipeline_mode = #tpu.pipeline_mode<synchronous>, transform_indices = @transform_6, window_bounds = array<i64: 128, 32>}, {pipeline_mode = #tpu.pipeline_mode<synchronous>, transform_indices = @transform_7, window_bounds = array<i64: 1, 128>}, {pipeline_mode = #tpu.pipeline_mode<synchronous>, transform_indices = @transform_8, window_bounds = array<i64: 8, 32>}, {transform_indices = @transform_9, window_bounds = array<i64: 1, 8, 32>}]} {
    %c0 = arith.constant 0 : index
    %c0_0 = arith.constant 0 : index
    %0 = vector.load %arg10[%c0, %c0_0] : memref<8x32xf32, #tpu.memory_space<vmem>>, vector<8x32xf32>
    %1 = vector.extract_strided_slice %0 {offsets = [0, 0], sizes = [1, 32], strides = [1, 1]} : vector<8x32xf32> to vector<1x32xf32>
    %2 = vector.extract_strided_slice %0 {offsets = [1, 0], sizes = [1, 32], strides = [1, 1]} : vector<8x32xf32> to vector<1x32xf32>
    %3 = vector.extract_strided_slice %0 {offsets = [2, 0], sizes = [1, 32], strides = [1, 1]} : vector<8x32xf32> to vector<1x32xf32>
    %4 = vector.extract_strided_slice %0 {offsets = [3, 0], sizes = [1, 32], strides = [1, 1]} : vector<8x32xf32> to vector<1x32xf32>
    %5 = vector.extract_strided_slice %0 {offsets = [4, 0], sizes = [1, 32], strides = [1, 1]} : vector<8x32xf32> to vector<1x32xf32>
    %6 = vector.extract_strided_slice %0 {offsets = [5, 0], sizes = [1, 32], strides = [1, 1]} : vector<8x32xf32> to vector<1x32xf32>
    %c0_i32 = arith.constant 0 : i32
    %7 = arith.cmpi eq, %arg1, %c0_i32 : i32
    %8 = arith.extui %7 : i1 to i32
    %c0_i32_1 = arith.constant 0 : i32
    %9 = arith.cmpi ne, %8, %c0_i32_1 : i32
    scf.if %9 {
      %c0_45 = arith.constant 0 : index
      %c0_46 = arith.constant 0 : index
      %c0_47 = arith.constant 0 : index
      %112 = vector.load %arg3[%c0_45, %c0_46, %c0_47] : memref<1x8x32xf32, #tpu.memory_space<vmem>>, vector<1x8x32xf32>
      %113 = vector.shape_cast %112 : vector<1x8x32xf32> to vector<8x32xf32>
      %cst_48 = arith.constant dense<0.000000e+00> : vector<8xf32>
      %114 = vector.multi_reduction <add>, %113, %cst_48 [1] : vector<8x32xf32> to vector<8xf32>
      %115 = vector.shape_cast %114 : vector<8xf32> to vector<8x1xf32>
      %cst_49 = arith.constant 3.200000e+01 : f32
      %116 = vector.broadcast %cst_49 : f32 to vector<8x1xf32>
      %117 = arith.divf %115, %116 : vector<8x1xf32>
      %118 = vector.broadcast %117 : vector<8x1xf32> to vector<8x32xf32>
      %119 = arith.subf %113, %118 : vector<8x32xf32>
      %120 = arith.mulf %119, %119 : vector<8x32xf32>
      %cst_50 = arith.constant dense<0.000000e+00> : vector<8xf32>
      %121 = vector.multi_reduction <add>, %120, %cst_50 [1] : vector<8x32xf32> to vector<8xf32>
      %122 = vector.shape_cast %121 : vector<8xf32> to vector<8x1xf32>
      %cst_51 = arith.constant 3.200000e+01 : f32
      %123 = vector.broadcast %cst_51 : f32 to vector<8x1xf32>
      %124 = arith.divf %122, %123 : vector<8x1xf32>
      %125 = vector.broadcast %117 : vector<8x1xf32> to vector<8x32xf32>
      %126 = arith.subf %113, %125 : vector<8x32xf32>
      %cst_52 = arith.constant 9.99999974E-6 : f32
      %127 = vector.broadcast %cst_52 : f32 to vector<8x1xf32>
      %128 = arith.addf %124, %127 : vector<8x1xf32>
      %129 = math.rsqrt %128 : vector<8x1xf32>
      %130 = vector.broadcast %129 : vector<8x1xf32> to vector<8x32xf32>
      %131 = arith.mulf %126, %130 : vector<8x32xf32>
      %132 = vector.broadcast %1 : vector<1x32xf32> to vector<8x32xf32>
      %133 = arith.mulf %131, %132 : vector<8x32xf32>
      %134 = vector.broadcast %2 : vector<1x32xf32> to vector<8x32xf32>
      %135 = arith.addf %133, %134 : vector<8x32xf32>
      %136 = arith.truncf %135 : vector<8x32xf32> to vector<8x32xbf16>
      %c0_53 = arith.constant 0 : index
      %c0_54 = arith.constant 0 : index
      %137 = vector.load %arg5[%c0_53, %c0_54] : memref<32x64xbf16, #tpu.memory_space<vmem>>, vector<32x64xbf16>
      %cst_55 = arith.constant dense<0.000000e+00> : vector<8x64xf32>
      %138 = tpu.matmul %136, %137, %cst_55 {dimension_numbers = #tpu.dot_dimension_numbers<[1], [0], [0], [1], [0, 0, 1, 1], [], []>} : vector<8x32xbf16>, vector<32x64xbf16>, vector<8x64xf32> -> vector<8x64xf32>
      %139 = vector.extract_strided_slice %138 {offsets = [0, 0], sizes = [8, 32], strides = [1, 1]} : vector<8x64xf32> to vector<8x32xf32>
      %140 = vector.shape_cast %139 : vector<8x32xf32> to vector<8x4x8xf32>
      %141 = vector.extract_strided_slice %138 {offsets = [0, 32], sizes = [8, 32], strides = [1, 1]} : vector<8x64xf32> to vector<8x32xf32>
      %142 = vector.shape_cast %141 : vector<8x32xf32> to vector<8x4x8xf32>
      %143 = tpu.transpose %140, [1, 0, 2] : vector<8x4x8xf32> -> vector<4x8x8xf32>
      %144 = arith.truncf %143 : vector<4x8x8xf32> to vector<4x8x8xbf16>
      %c0_56 = arith.constant 0 : index
      %c0_57 = arith.constant 0 : index
      %c0_58 = arith.constant 0 : index
      %145 = vector.load %arg12[%c0_56, %c0_57, %c0_58] : memref<4x8x8xbf16, #tpu.memory_space<vmem>>, vector<4x8x8xbf16>
      tpu.vector_store %arg12[%c0_56, %c0_57, %c0_58], %144 {strides = array<i32>} : memref<4x8x8xbf16, #tpu.memory_space<vmem>>, vector<4x8x8xbf16>,
      %146 = tpu.transpose %142, [1, 0, 2] : vector<8x4x8xf32> -> vector<4x8x8xf32>
      %147 = arith.truncf %146 : vector<4x8x8xf32> to vector<4x8x8xbf16>
      %c0_59 = arith.constant 0 : index
      %c0_60 = arith.constant 0 : index
      %c0_61 = arith.constant 0 : index
      %148 = vector.load %arg13[%c0_59, %c0_60, %c0_61] : memref<4x8x8xbf16, #tpu.memory_space<vmem>>, vector<4x8x8xbf16>
      tpu.vector_store %arg13[%c0_59, %c0_60, %c0_61], %147 {strides = array<i32>} : memref<4x8x8xbf16, #tpu.memory_space<vmem>>, vector<4x8x8xbf16>,
    } else {
    }
    %c0_2 = arith.constant 0 : index
    %c0_3 = arith.constant 0 : index
    %c0_4 = arith.constant 0 : index
    %10 = vector.load %arg2[%c0_2, %c0_3, %c0_4] : memref<1x8x32xf32, #tpu.memory_space<vmem>>, vector<1x8x32xf32>
    %11 = vector.shape_cast %10 : vector<1x8x32xf32> to vector<8x32xf32>
    %cst = arith.constant dense<0.000000e+00> : vector<8xf32>
    %12 = vector.multi_reduction <add>, %11, %cst [1] : vector<8x32xf32> to vector<8xf32>
    %13 = vector.shape_cast %12 : vector<8xf32> to vector<8x1xf32>
    %cst_5 = arith.constant 3.200000e+01 : f32
    %14 = vector.broadcast %cst_5 : f32 to vector<8x1xf32>
    %15 = arith.divf %13, %14 : vector<8x1xf32>
    %16 = vector.broadcast %15 : vector<8x1xf32> to vector<8x32xf32>
    %17 = arith.subf %11, %16 : vector<8x32xf32>
    %18 = arith.mulf %17, %17 : vector<8x32xf32>
    %cst_6 = arith.constant dense<0.000000e+00> : vector<8xf32>
    %19 = vector.multi_reduction <add>, %18, %cst_6 [1] : vector<8x32xf32> to vector<8xf32>
    %20 = vector.shape_cast %19 : vector<8xf32> to vector<8x1xf32>
    %cst_7 = arith.constant 3.200000e+01 : f32
    %21 = vector.broadcast %cst_7 : f32 to vector<8x1xf32>
    %22 = arith.divf %20, %21 : vector<8x1xf32>
    %23 = vector.broadcast %15 : vector<8x1xf32> to vector<8x32xf32>
    %24 = arith.subf %11, %23 : vector<8x32xf32>
    %cst_8 = arith.constant 9.99999974E-6 : f32
    %25 = vector.broadcast %cst_8 : f32 to vector<8x1xf32>
    %26 = arith.addf %22, %25 : vector<8x1xf32>
    %27 = math.rsqrt %26 : vector<8x1xf32>
    %28 = vector.broadcast %27 : vector<8x1xf32> to vector<8x32xf32>
    %29 = arith.mulf %24, %28 : vector<8x32xf32>
    %30 = vector.broadcast %1 : vector<1x32xf32> to vector<8x32xf32>
    %31 = arith.mulf %29, %30 : vector<8x32xf32>
    %32 = vector.broadcast %2 : vector<1x32xf32> to vector<8x32xf32>
    %33 = arith.addf %31, %32 : vector<8x32xf32>
    %34 = arith.truncf %33 : vector<8x32xf32> to vector<8x32xbf16>
    %c0_9 = arith.constant 0 : index
    %c0_10 = arith.constant 0 : index
    %35 = vector.load %arg4[%c0_9, %c0_10] : memref<32x32xbf16, #tpu.memory_space<vmem>>, vector<32x32xbf16>
    %cst_11 = arith.constant dense<0.000000e+00> : vector<8x32xf32>
    %36 = tpu.matmul %34, %35, %cst_11 {dimension_numbers = #tpu.dot_dimension_numbers<[1], [0], [0], [1], [0, 0, 1, 1], [], []>} : vector<8x32xbf16>, vector<32x32xbf16>, vector<8x32xf32> -> vector<8x32xf32>
    %37 = vector.shape_cast %36 : vector<8x32xf32> to vector<8x4x8xf32>
    %38 = tpu.transpose %37, [1, 0, 2] : vector<8x4x8xf32> -> vector<4x8x8xf32>
    %39 = arith.truncf %38 : vector<4x8x8xf32> to vector<4x8x8xbf16>
    %c0_12 = arith.constant 0 : index
    %c0_13 = arith.constant 0 : index
    %c0_14 = arith.constant 0 : index
    %40 = vector.load %arg12[%c0_12, %c0_13, %c0_14] : memref<4x8x8xbf16, #tpu.memory_space<vmem>>, vector<4x8x8xbf16>
    "tpu.trace_start"() <{level = 10 : i32, message = "hqd,hkd->hqk"}> : () -> ()
    %cst_15 = arith.constant dense<0.000000e+00> : vector<4x8x8xf32>
    %41 = tpu.matmul %39, %40, %cst_15 {dimension_numbers = #tpu.dot_dimension_numbers<[2], [2], [1], [1], [0, 0, 0, 1, 1, 1], [0], [0]>} : vector<4x8x8xbf16>, vector<4x8x8xbf16>, vector<4x8x8xf32> -> vector<4x8x8xf32>
    "tpu.trace_stop"() : () -> ()
    %42 = tpu.iota {dimensions = array<i32: 0>} : vector<8x8xi32>
    %c8_i32 = arith.constant 8 : i32
    %43 = arith.muli %arg1, %c8_i32 : i32
    %44 = vector.broadcast %43 : i32 to vector<8x8xi32>
    %45 = arith.addi %42, %44 : vector<8x8xi32>
    %46 = tpu.iota {dimensions = array<i32: 1>} : vector<8x8xi32>
    %47 = arith.cmpi sge, %45, %46 : vector<8x8xi32>
    %48 = vector.shape_cast %47 : vector<8x8xi1> to vector<1x8x8xi1>
    %cst_16 = arith.constant -1.000000e+30 : f32
    %49 = vector.shape_cast %48 : vector<1x8x8xi1> to vector<1x8x8xi1>
    %50 = vector.broadcast %49 : vector<1x8x8xi1> to vector<4x8x8xi1>
    %51 = vector.broadcast %cst_16 : f32 to vector<4x8x8xf32>
    %52 = arith.select %50, %41, %51 : vector<4x8x8xi1>, vector<4x8x8xf32>
    %cst_17 = arith.constant dense<0xFF800000> : vector<4x8xf32>
    %53 = vector.multi_reduction <maximumf>, %52, %cst_17 [2] : vector<4x8x8xf32> to vector<4x8xf32>
    %54 = vector.shape_cast %53 : vector<4x8xf32> to vector<4x8x1xf32>
    %55 = vector.broadcast %54 : vector<4x8x1xf32> to vector<4x8x8xf32>
    %56 = arith.subf %52, %55 : vector<4x8x8xf32>
    %57 = math.exp %56 : vector<4x8x8xf32>
    %cst_18 = arith.constant dense<0.000000e+00> : vector<4x8xf32>
    %58 = vector.multi_reduction <add>, %57, %cst_18 [2] : vector<4x8x8xf32> to vector<4x8xf32>
    %59 = vector.shape_cast %58 : vector<4x8xf32> to vector<4x8x1xf32>
    %60 = tpu.reciprocal %59 {approx = true} : vector<4x8x1xf32> -> vector<4x8x1xf32>
    %61 = vector.broadcast %60 : vector<4x8x1xf32> to vector<4x8x8xf32>
    %62 = arith.mulf %57, %61 : vector<4x8x8xf32>
    %63 = arith.truncf %62 : vector<4x8x8xf32> to vector<4x8x8xbf16>
    %c0_19 = arith.constant 0 : index
    %c0_20 = arith.constant 0 : index
    %c0_21 = arith.constant 0 : index
    %64 = vector.load %arg13[%c0_19, %c0_20, %c0_21] : memref<4x8x8xbf16, #tpu.memory_space<vmem>>, vector<4x8x8xbf16>
    "tpu.trace_start"() <{level = 10 : i32, message = "hqk,hkd->hqd"}> : () -> ()
    %cst_22 = arith.constant dense<0.000000e+00> : vector<4x8x8xf32>
    %65 = tpu.matmul %63, %64, %cst_22 {dimension_numbers = #tpu.dot_dimension_numbers<[2], [1], [1], [2], [0, 0, 0, 1, 1, 2], [0], [0]>} : vector<4x8x8xbf16>, vector<4x8x8xbf16>, vector<4x8x8xf32> -> vector<4x8x8xf32>
    "tpu.trace_stop"() : () -> ()
    %66 = arith.truncf %65 : vector<4x8x8xf32> to vector<4x8x8xbf16>
    %c0_23 = arith.constant 0 : index
    %c0_24 = arith.constant 0 : index
    %c0_25 = arith.constant 0 : index
    %67 = vector.load %arg6[%c0_23, %c0_24, %c0_25] : memref<4x8x32xbf16, #tpu.memory_space<vmem>>, vector<4x8x32xbf16>
    "tpu.trace_start"() <{level = 10 : i32, message = "hqd,hdc->hqc"}> : () -> ()
    %cst_26 = arith.constant dense<0.000000e+00> : vector<4x8x32xf32>
    %68 = tpu.matmul %66, %67, %cst_26 {dimension_numbers = #tpu.dot_dimension_numbers<[2], [1], [1], [2], [0, 0, 0, 1, 1, 2], [0], [0]>} : vector<4x8x8xbf16>, vector<4x8x32xbf16>, vector<4x8x32xf32> -> vector<4x8x32xf32>
    "tpu.trace_stop"() : () -> ()
    %cst_27 = arith.constant dense<0.000000e+00> : vector<8x32xf32>
    %69 = vector.multi_reduction <add>, %68, %cst_27 [0] : vector<4x8x32xf32> to vector<8x32xf32>
    %70 = vector.broadcast %5 : vector<1x32xf32> to vector<8x32xf32>
    %71 = arith.addf %69, %70 : vector<8x32xf32>
    %72 = arith.addf %11, %71 : vector<8x32xf32>
    %cst_28 = arith.constant dense<0.000000e+00> : vector<8xf32>
    %73 = vector.multi_reduction <add>, %72, %cst_28 [1] : vector<8x32xf32> to vector<8xf32>
    %74 = vector.shape_cast %73 : vector<8xf32> to vector<8x1xf32>
    %cst_29 = arith.constant 3.200000e+01 : f32
    %75 = vector.broadcast %cst_29 : f32 to vector<8x1xf32>
    %76 = arith.divf %74, %75 : vector<8x1xf32>
    %77 = vector.broadcast %76 : vector<8x1xf32> to vector<8x32xf32>
    %78 = arith.subf %72, %77 : vector<8x32xf32>
    %79 = arith.mulf %78, %78 : vector<8x32xf32>
    %cst_30 = arith.constant dense<0.000000e+00> : vector<8xf32>
    %80 = vector.multi_reduction <add>, %79, %cst_30 [1] : vector<8x32xf32> to vector<8xf32>
    %81 = vector.shape_cast %80 : vector<8xf32> to vector<8x1xf32>
    %cst_31 = arith.constant 3.200000e+01 : f32
    %82 = vector.broadcast %cst_31 : f32 to vector<8x1xf32>
    %83 = arith.divf %81, %82 : vector<8x1xf32>
    %84 = vector.broadcast %76 : vector<8x1xf32> to vector<8x32xf32>
    %85 = arith.subf %72, %84 : vector<8x32xf32>
    %cst_32 = arith.constant 9.99999974E-6 : f32
    %86 = vector.broadcast %cst_32 : f32 to vector<8x1xf32>
    %87 = arith.addf %83, %86 : vector<8x1xf32>
    %88 = math.rsqrt %87 : vector<8x1xf32>
    %89 = vector.broadcast %88 : vector<8x1xf32> to vector<8x32xf32>
    %90 = arith.mulf %85, %89 : vector<8x32xf32>
    %91 = vector.broadcast %3 : vector<1x32xf32> to vector<8x32xf32>
    %92 = arith.mulf %90, %91 : vector<8x32xf32>
    %93 = vector.broadcast %4 : vector<1x32xf32> to vector<8x32xf32>
    %94 = arith.addf %92, %93 : vector<8x32xf32>
    %95 = arith.truncf %94 : vector<8x32xf32> to vector<8x32xbf16>
    %c0_33 = arith.constant 0 : index
    %c0_34 = arith.constant 0 : index
    %96 = vector.load %arg7[%c0_33, %c0_34] : memref<32x128xbf16, #tpu.memory_space<vmem>>, vector<32x128xbf16>
    %cst_35 = arith.constant dense<0.000000e+00> : vector<8x128xf32>
    %97 = tpu.matmul %95, %96, %cst_35 {dimension_numbers = #tpu.dot_dimension_numbers<[1], [0], [0], [1], [0, 0, 1, 1], [], []>} : vector<8x32xbf16>, vector<32x128xbf16>, vector<8x128xf32> -> vector<8x128xf32>
    %c0_36 = arith.constant 0 : index
    %c0_37 = arith.constant 0 : index
    %98 = vector.load %arg9[%c0_36, %c0_37] : memref<1x128xf32, #tpu.memory_space<vmem>>, vector<1x128xf32>
    %99 = vector.broadcast %98 : vector<1x128xf32> to vector<8x128xf32>
    %100 = arith.addf %97, %99 : vector<8x128xf32>
    %cst_38 = arith.constant 0.000000e+00 : f32
    %101 = vector.broadcast %cst_38 : f32 to vector<8x128xf32>
    %102 = arith.maximumf %100, %101 : vector<8x128xf32>
    %103 = arith.truncf %102 : vector<8x128xf32> to vector<8x128xbf16>
    %c0_39 = arith.constant 0 : index
    %c0_40 = arith.constant 0 : index
    %104 = vector.load %arg8[%c0_39, %c0_40] : memref<128x32xbf16, #tpu.memory_space<vmem>>, vector<128x32xbf16>
    %cst_41 = arith.constant dense<0.000000e+00> : vector<8x32xf32>
    %105 = tpu.matmul %103, %104, %cst_41 {dimension_numbers = #tpu.dot_dimension_numbers<[1], [0], [0], [1], [0, 0, 1, 1], [], []>} : vector<8x128xbf16>, vector<128x32xbf16>, vector<8x32xf32> -> vector<8x32xf32>
    %106 = vector.broadcast %6 : vector<1x32xf32> to vector<8x32xf32>
    %107 = arith.addf %105, %106 : vector<8x32xf32>
    %108 = arith.addf %72, %107 : vector<8x32xf32>
    %c0_42 = arith.constant 0 : index
    %c0_43 = arith.constant 0 : index
    %c0_44 = arith.constant 0 : index
    %109 = vector.load %arg11[%c0_42, %c0_43, %c0_44] : memref<1x8x32xf32, #tpu.memory_space<vmem>>, vector<1x8x32xf32>
    %110 = vector.shape_cast %109 : vector<1x8x32xf32> to vector<8x32xf32>
    %111 = vector.shape_cast %108 : vector<8x32xf32> to vector<1x8x32xf32>
    tpu.vector_store %arg11[%c0_42, %c0_43, %c0_44], %111 {strides = array<i32>} : memref<1x8x32xf32, #tpu.memory_space<vmem>>, vector<1x8x32xf32>,
    return
  }
  func.func @transform_0(%arg0: i32, %arg1: i32) -> (i32, i32, i32) {
    %c0_i32 = arith.constant 0 : i32
    %c0_i32_0 = arith.constant 0 : i32
    return %arg0, %arg1, %c0_i32 : i32, i32, i32
  }
  func.func @transform_1(%arg0: i32, %arg1: i32) -> (i32, i32, i32) {
    %c0_i32 = arith.constant 0 : i32
    %c0_i32_0 = arith.constant 0 : i32
    %c0_i32_1 = arith.constant 0 : i32
    return %arg0, %c0_i32, %c0_i32_0 : i32, i32, i32
  }
  func.func @transform_2(%arg0: i32, %arg1: i32) -> (i32, i32) {
    %c0_i32 = arith.constant 0 : i32
    %c0_i32_0 = arith.constant 0 : i32
    %c0_i32_1 = arith.constant 0 : i32
    return %c0_i32, %c0_i32_0 : i32, i32
  }
  func.func @transform_3(%arg0: i32, %arg1: i32) -> (i32, i32) {
    %c0_i32 = arith.constant 0 : i32
    %c0_i32_0 = arith.constant 0 : i32
    %c0_i32_1 = arith.constant 0 : i32
    return %c0_i32, %c0_i32_0 : i32, i32
  }
  func.func @transform_4(%arg0: i32, %arg1: i32) -> (i32, i32, i32) {
    %c0_i32 = arith.constant 0 : i32
    %c0_i32_0 = arith.constant 0 : i32
    %c0_i32_1 = arith.constant 0 : i32
    %c0_i32_2 = arith.constant 0 : i32
    return %c0_i32, %c0_i32_0, %c0_i32_1 : i32, i32, i32
  }
  func.func @transform_5(%arg0: i32, %arg1: i32) -> (i32, i32) {
    %c0_i32 = arith.constant 0 : i32
    %c0_i32_0 = arith.constant 0 : i32
    %c0_i32_1 = arith.constant 0 : i32
    return %c0_i32, %c0_i32_0 : i32, i32
  }
  func.func @transform_6(%arg0: i32, %arg1: i32) -> (i32, i32) {
    %c0_i32 = arith.constant 0 : i32
    %c0_i32_0 = arith.constant 0 : i32
    %c0_i32_1 = arith.constant 0 : i32
    return %c0_i32, %c0_i32_0 : i32, i32
  }
  func.func @transform_7(%arg0: i32, %arg1: i32) -> (i32, i32) {
    %c0_i32 = arith.constant 0 : i32
    %c0_i32_0 = arith.constant 0 : i32
    %c0_i32_1 = arith.constant 0 : i32
    return %c0_i32, %c0_i32_0 : i32, i32
  }
  func.func @transform_8(%arg0: i32, %arg1: i32) -> (i32, i32) {
    %c0_i32 = arith.constant 0 : i32
    %c0_i32_0 = arith.constant 0 : i32
    %c0_i32_1 = arith.constant 0 : i32
    return %c0_i32, %c0_i32_0 : i32, i32
  }
  func.func @transform_9(%arg0: i32, %arg1: i32) -> (i32, i32, i32) {
    %c0_i32 = arith.constant 0 : i32
    %c0_i32_0 = arith.constant 0 : i32
    return %arg0, %arg1, %c0_i32 : i32, i32, i32
  }
}

</mosaic_0001>

<llo_original>
// kernel: tpu_custom_call.1
$region0: #{tpu_custom_call.1}
  #allocation0 [shape = 'u32[]', space=smem, size = 0x4, offset = 0x4, fixed_abs, tag = 'smem constant byte address 0x4 - core index']
  #allocation1 [shape = 'u32[72,128]{1,0:T(1,128)}', space=vmem, size = 0x9000, scoped, tag = 'internal scratch']
  #allocation2 [shape = 'bf16[4,8,8]{2,1,0:T(8,128)(2,1)}', space=vmem, size = 0x2000, scoped, tag = 'scratch operand']
  #allocation3 [shape = 'bf16[4,8,8]{2,1,0:T(8,128)(2,1)}', space=vmem, size = 0x2000, scoped, tag = 'scratch operand']
  %s0 = inlined_call_operand.vmem [shape: f32[2,8,32], index: 0, kind: input, shape index: {}]
  %s1 = inlined_call_operand.vmem [shape: f32[2,8,32], index: 1, kind: input, shape index: {}]
  %s2 = inlined_call_operand.vmem [shape: bf16[32,32], index: 2, kind: input, shape index: {}]
  %s3 = inlined_call_operand.vmem [shape: bf16[32,64], index: 3, kind: input, shape index: {}]
  %s4 = inlined_call_operand.vmem [shape: bf16[4,8,32], index: 4, kind: input, shape index: {}]
  %s5 = inlined_call_operand.hbm [shape: bf16[32,128], index: 5, kind: input, shape index: {}]
  %s6 = inlined_call_operand.vmem [shape: bf16[128,32], index: 6, kind: input, shape index: {}]
  %s7 = inlined_call_operand.vmem [shape: f32[1,128], index: 7, kind: input, shape index: {}]
  %s8 = inlined_call_operand.hbm [shape: f32[8,32], index: 8, kind: input, shape index: {}]
  %s9 = inlined_call_operand.hbm [shape: f32[2,8,32], index: 9, kind: output, shape index: {}]
  %s10 = sld [smem:[#allocation0]]
  $region81: #{tpu_custom_call.1} parent=0
    _
  %s12 = ssub.s32 1, %s10
  %s13 = scalar_select 0, %s12, %s10
  $region1: #{tpu_custom_call.1} parent=0
    #allocation4 [shape = 'u8[8192]{0}', space=vmem, size = 0x2000, scoped, tag = 'input window, operand 5, single buffered']
    #allocation5 [shape = 's32[2]{0}', space=sflag, size = 0x8, scoped, tag = 'scoped memory for tpu_custom_call.1']
    #allocation6 [shape = 's32[2]{0}', space=sflag, size = 0x8, scoped, tag = 'scoped memory for tpu_custom_call.1']
    #allocation7 [shape = 'u8[4096]{0}', space=vmem, size = 0x1000, scoped, tag = 'input window, operand 8, single buffered']
    #allocation8 [shape = 's32[1]{0}', space=sflag, size = 0x4, scoped, tag = 'scoped memory for tpu_custom_call.1']
    #allocation9 [shape = 'u8[8192]{0}', space=vmem, size = 0x2000, scoped, tag = 'output window, operand 0']
    %14 = vsyncpa [#allocation5], 0
    %15 = vsyncpa [#allocation8], 0
    %16 = vsyncpa [#allocation6], 0
    %s17 = scalar_lea.sflag [#allocation6], 1
    %18 = vsyncpa %s17, 0
    loop: start=0, step=1, limit=4
    $region2: #{tpu_custom_call.1} parent=1 // loop_pre_header
      _
    $region3: #{tpu_custom_call.1} parent=1 // loop_header
      %s20 = sphi 0, %s24
      %p21 = scmp.ge.s32.totalorder %s20, 4
      %s27 = sphi 0, %s39
      %s28 = sphi 0, %s35
      %s29 = sphi 0, %s27
      %s30 = sphi 0, %s28
      %s31 = sphi 0, %s29
      %s32 = sphi 0, %s30
      %s44 = sphi 0, %s46
      %s47 = sphi 0, %s44
      %s48 = sphi 0, %s47
      %s64 = sphi 0, %s48
      %s70 = sphi 0, %s72
      %s73 = sphi 0, %s70
      %s74 = sphi 0, %s73
      %s90 = sphi 0, %s74
      %s94 = sphi 0, %s94
      %s96 = sphi 0, %s94
      %s97 = sphi 0, %s96
      %s111 = sphi 0, %s97
      %s115 = sphi 0, %s115
      %s117 = sphi 0, %s115
      %s118 = sphi 0, %s117
      %s132 = sphi 0, %s118
      %s136 = sphi 0, %s136
      %s138 = sphi 0, %s136
      %s139 = sphi 0, %s138
      %s153 = sphi 0, %s139
      %s157 = sphi 0, %s157
      %s159 = sphi 0, %s157
      %s160 = sphi 0, %s159
      %s174 = sphi 0, %s160
      %s178 = sphi 0, %s178
      %s180 = sphi 0, %s178
      %s181 = sphi 0, %s180
      %s195 = sphi 0, %s181
      %s199 = sphi 0, %s199
      %s201 = sphi 0, %s199
      %s202 = sphi 0, %s201
      %s216 = sphi 0, %s202
      %s220 = sphi 0, %s220
      %s222 = sphi 0, %s220
      %s223 = sphi 0, %s222
      %s237 = sphi 0, %s223
      %s245 = sphi 0, %s247
      %s248 = sphi 0, %s245
      %s249 = sphi 0, %s248
      %s265 = sphi 0, %s249
    $region4: #{tpu_custom_call.1} parent=1 // loop_header_branch
      %23 = sbr.rel (%p21) target = $region8
    $region5: #{tpu_custom_call.1} parent=1 // loop_body
      %s25 = ssub.s32 %s20, 1
      %s26 = ssub.s32 %s20, 2
      %s33 = sadd.s32 1, %s28
      %p34 = scmp.ge.s32.totalorder %s33, 1
      %s35 = scalar_select %p34, 0, %s33
      %s36 = sadd.s32 1, %s27
      %s37 = scalar_select %p34, %s36, %s27
      %p38 = scmp.ge.s32.totalorder %s37, 2
      %s39 = scalar_select %p38, 0, %s37
      %s40 = ssub.s32 %s27, %s39
      %s41 = ssub.s32 %s28, %s35
      %s42 = sor.u32 %s40, %s41
      %p43 = scmp.eq.s32.totalorder %s42, 0
      %s45 = sadd.s32 %s44, 1
      %s46 = scalar_select %p43, %s44, %s45
      %p49 = pneg %p43
      %p50 = scmp.eq.s32.totalorder %s20, 1
      %p51 = por %p49, %p50
      %p52 = scmp.ne.s32.totalorder %s44, %s47
      %p53 = scmp.eq.s32.totalorder %s20, 0
      %p54 = por %p52, %p53
      %p55 = scmp.ne.s32.totalorder %s44, %s47
      %p56 = scmp.eq.s32.totalorder %s25, 1
      %p57 = por %p55, %p56
      %p58 = scmp.ne.s32.totalorder %s47, %s48
      %p59 = scmp.eq.s32.totalorder %s25, 0
      %p60 = por %p58, %p59
      %p61 = scmp.ne.s32.totalorder %s47, %s48
      %p62 = scmp.eq.s32.totalorder %s26, 1
      %p63 = por %p61, %p62
      %p65 = scmp.ne.s32.totalorder %s48, %s64
      %p66 = scmp.eq.s32.totalorder %s26, 0
      %p67 = por %p65, %p66
      %s68 = ssub.s32 %s27, %s39
      %p69 = scmp.eq.s32.totalorder %s68, 0
      %s71 = sadd.s32 %s70, 1
      %s72 = scalar_select %p69, %s70, %s71
      %p75 = pneg %p69
      %p76 = scmp.eq.s32.totalorder %s20, 1
      %p77 = por %p75, %p76
      %p78 = scmp.ne.s32.totalorder %s70, %s73
      %p79 = scmp.eq.s32.totalorder %s20, 0
      %p80 = por %p78, %p79
      %p81 = scmp.ne.s32.totalorder %s70, %s73
      %p82 = scmp.eq.s32.totalorder %s25, 1
      %p83 = por %p81, %p82
      %p84 = scmp.ne.s32.totalorder %s73, %s74
      %p85 = scmp.eq.s32.totalorder %s25, 0
      %p86 = por %p84, %p85
      %p87 = scmp.ne.s32.totalorder %s73, %s74
      %p88 = scmp.eq.s32.totalorder %s26, 1
      %p89 = por %p87, %p88
      %p91 = scmp.ne.s32.totalorder %s74, %s90
      %p92 = scmp.eq.s32.totalorder %s26, 0
      %p93 = por %p91, %p92
      %s95 = sadd.s32 %s94, 1
      %p98 = scmp.eq.s32.totalorder %s20, 1
      %p99 = scmp.ne.s32.totalorder %s94, %s96
      %p100 = scmp.eq.s32.totalorder %s20, 0
      %p101 = por %p99, %p100
      %p102 = scmp.ne.s32.totalorder %s94, %s96
      %p103 = scmp.eq.s32.totalorder %s25, 1
      %p104 = por %p102, %p103
      %p105 = scmp.ne.s32.totalorder %s96, %s97
      %p106 = scmp.eq.s32.totalorder %s25, 0
      %p107 = por %p105, %p106
      %p108 = scmp.ne.s32.totalorder %s96, %s97
      %p109 = scmp.eq.s32.totalorder %s26, 1
      %p110 = por %p108, %p109
      %p112 = scmp.ne.s32.totalorder %s97, %s111
      %p113 = scmp.eq.s32.totalorder %s26, 0
      %p114 = por %p112, %p113
      %s116 = sadd.s32 %s115, 1
      %p119 = scmp.eq.s32.totalorder %s20, 1
      %p120 = scmp.ne.s32.totalorder %s115, %s117
      %p121 = scmp.eq.s32.totalorder %s20, 0
      %p122 = por %p120, %p121
      %p123 = scmp.ne.s32.totalorder %s115, %s117
      %p124 = scmp.eq.s32.totalorder %s25, 1
      %p125 = por %p123, %p124
      %p126 = scmp.ne.s32.totalorder %s117, %s118
      %p127 = scmp.eq.s32.totalorder %s25, 0
      %p128 = por %p126, %p127
      %p129 = scmp.ne.s32.totalorder %s117, %s118
      %p130 = scmp.eq.s32.totalorder %s26, 1
      %p131 = por %p129, %p130
      %p133 = scmp.ne.s32.totalorder %s118, %s132
      %p134 = scmp.eq.s32.totalorder %s26, 0
      %p135 = por %p133, %p134
      %s137 = sadd.s32 %s136, 1
      %p140 = scmp.eq.s32.totalorder %s20, 1
      %p141 = scmp.ne.s32.totalorder %s136, %s138
      %p142 = scmp.eq.s32.totalorder %s20, 0
      %p143 = por %p141, %p142
      %p144 = scmp.ne.s32.totalorder %s136, %s138
      %p145 = scmp.eq.s32.totalorder %s25, 1
      %p146 = por %p144, %p145
      %p147 = scmp.ne.s32.totalorder %s138, %s139
      %p148 = scmp.eq.s32.totalorder %s25, 0
      %p149 = por %p147, %p148
      %p150 = scmp.ne.s32.totalorder %s138, %s139
      %p151 = scmp.eq.s32.totalorder %s26, 1
      %p152 = por %p150, %p151
      %p154 = scmp.ne.s32.totalorder %s139, %s153
      %p155 = scmp.eq.s32.totalorder %s26, 0
      %p156 = por %p154, %p155
      %s158 = sadd.s32 %s157, 1
      %p161 = scmp.eq.s32.totalorder %s20, 1
      %p162 = scmp.ne.s32.totalorder %s157, %s159
      %p163 = scmp.eq.s32.totalorder %s20, 0
      %p164 = por %p162, %p163
      %p165 = scmp.ne.s32.totalorder %s157, %s159
      %p166 = scmp.eq.s32.totalorder %s25, 1
      %p167 = por %p165, %p166
      %p168 = scmp.ne.s32.totalorder %s159, %s160
      %p169 = scmp.eq.s32.totalorder %s25, 0
      %p170 = por %p168, %p169
      %p171 = scmp.ne.s32.totalorder %s159, %s160
      %p172 = scmp.eq.s32.totalorder %s26, 1
      %p173 = por %p171, %p172
      %p175 = scmp.ne.s32.totalorder %s160, %s174
      %p176 = scmp.eq.s32.totalorder %s26, 0
      %p177 = por %p175, %p176
      %s179 = sadd.s32 %s178, 1
      %p182 = scmp.eq.s32.totalorder %s20, 1
      %p183 = scmp.ne.s32.totalorder %s178, %s180
      %p184 = scmp.eq.s32.totalorder %s20, 0
      %p185 = por %p183, %p184
      %p186 = scmp.ne.s32.totalorder %s178, %s180
      %p187 = scmp.eq.s32.totalorder %s25, 1
      %p188 = por %p186, %p187
      %p189 = scmp.ne.s32.totalorder %s180, %s181
      %p190 = scmp.eq.s32.totalorder %s25, 0
      %p191 = por %p189, %p190
      %p192 = scmp.ne.s32.totalorder %s180, %s181
      %p193 = scmp.eq.s32.totalorder %s26, 1
      %p194 = por %p192, %p193
      %p196 = scmp.ne.s32.totalorder %s181, %s195
      %p197 = scmp.eq.s32.totalorder %s26, 0
      %p198 = por %p196, %p197
      %s200 = sadd.s32 %s199, 1
      %p203 = scmp.eq.s32.totalorder %s20, 1
      %p204 = scmp.ne.s32.totalorder %s199, %s201
      %p205 = scmp.eq.s32.totalorder %s20, 0
      %p206 = por %p204, %p205
      %p207 = scmp.ne.s32.totalorder %s199, %s201
      %p208 = scmp.eq.s32.totalorder %s25, 1
      %p209 = por %p207, %p208
      %p210 = scmp.ne.s32.totalorder %s201, %s202
      %p211 = scmp.eq.s32.totalorder %s25, 0
      %p212 = por %p210, %p211
      %p213 = scmp.ne.s32.totalorder %s201, %s202
      %p214 = scmp.eq.s32.totalorder %s26, 1
      %p215 = por %p213, %p214
      %p217 = scmp.ne.s32.totalorder %s202, %s216
      %p218 = scmp.eq.s32.totalorder %s26, 0
      %p219 = por %p217, %p218
      %s221 = sadd.s32 %s220, 1
      %p224 = scmp.eq.s32.totalorder %s20, 1
      %p225 = scmp.ne.s32.totalorder %s220, %s222
      %p226 = scmp.eq.s32.totalorder %s20, 0
      %p227 = por %p225, %p226
      %p228 = scmp.ne.s32.totalorder %s220, %s222
      %p229 = scmp.eq.s32.totalorder %s25, 1
      %p230 = por %p228, %p229
      %p231 = scmp.ne.s32.totalorder %s222, %s223
      %p232 = scmp.eq.s32.totalorder %s25, 0
      %p233 = por %p231, %p232
      %p234 = scmp.ne.s32.totalorder %s222, %s223
      %p235 = scmp.eq.s32.totalorder %s26, 1
      %p236 = por %p234, %p235
      %p238 = scmp.ne.s32.totalorder %s223, %s237
      %p239 = scmp.eq.s32.totalorder %s26, 0
      %p240 = por %p238, %p239
      %s241 = ssub.s32 %s27, %s39
      %s242 = ssub.s32 %s28, %s35
      %s243 = sor.u32 %s241, %s242
      %p244 = scmp.eq.s32.totalorder %s243, 0
      %s246 = sadd.s32 %s245, 1
      %s247 = scalar_select %p244, %s245, %s246
      %p250 = pneg %p244
      %p251 = scmp.eq.s32.totalorder %s20, 1
      %p252 = por %p250, %p251
      %p253 = scmp.ne.s32.totalorder %s245, %s248
      %p254 = scmp.eq.s32.totalorder %s20, 0
      %p255 = por %p253, %p254
      %p256 = scmp.ne.s32.totalorder %s245, %s248
      %p257 = scmp.eq.s32.totalorder %s25, 1
      %p258 = por %p256, %p257
      %p259 = scmp.ne.s32.totalorder %s248, %s249
      %p260 = scmp.eq.s32.totalorder %s25, 0
      %p261 = por %p259, %p260
      %p262 = scmp.ne.s32.totalorder %s248, %s249
      %p263 = scmp.eq.s32.totalorder %s26, 1
      %p264 = por %p262, %p263
      %p266 = scmp.ne.s32.totalorder %s249, %s265
      %p267 = scmp.eq.s32.totalorder %s26, 0
      %p268 = por %p266, %p267
      %p269 = scmp.le.s32.totalorder 1, %s20
      %p270 = scmp.lt.s32.totalorder %s20, 3
      %p271 = pnand %p269, %p270
      %p272 = pneg %p271
      // Predicated region
      $region9: #{tpu_custom_call.1} parent=5 // pred_check
        _
      $region10: #{tpu_custom_call.1} parent=5 // pred_check_branch
        %274 = sbr.rel (%p271) target = $region12
      $region11: #{tpu_custom_call.1} parent=5 // pred_region
        %s275 = ssub.s32 %s20, 1
        // Predicated region
        $region13: #{tpu_custom_call.1} parent=11 // pred_check
          %p276 = pneg %p107
        $region14: #{tpu_custom_call.1} parent=11 // pred_check_branch
          %278 = sbr.rel (%p276) target = $region16
        $region15: #{tpu_custom_call.1} parent=11 // pred_region
          _
        $region16: #{tpu_custom_call.1} parent=11 // pred_fallthru
          _
        // Predicated region
        $region17: #{tpu_custom_call.1} parent=11 // pred_check
          %p279 = pneg %p128
        $region18: #{tpu_custom_call.1} parent=11 // pred_check_branch
          %281 = sbr.rel (%p279) target = $region20
        $region19: #{tpu_custom_call.1} parent=11 // pred_region
          _
        $region20: #{tpu_custom_call.1} parent=11 // pred_fallthru
          _
        // Predicated region
        $region21: #{tpu_custom_call.1} parent=11 // pred_check
          %p282 = pneg %p149
        $region22: #{tpu_custom_call.1} parent=11 // pred_check_branch
          %284 = sbr.rel (%p282) target = $region24
        $region23: #{tpu_custom_call.1} parent=11 // pred_region
          _
        $region24: #{tpu_custom_call.1} parent=11 // pred_fallthru
          _
        // Predicated region
        $region25: #{tpu_custom_call.1} parent=11 // pred_check
          %p285 = pneg %p170
        $region26: #{tpu_custom_call.1} parent=11 // pred_check_branch
          %287 = sbr.rel (%p285) target = $region28
        $region27: #{tpu_custom_call.1} parent=11 // pred_region
          %289 = vsyncadd [#allocation5], 0
          %s290 = sshll.u32 %s5, 4
          %s291 = int_to_ptr.hbm [resolvable:$true] %s290
          %s292 = sshll.u32 [#allocation4], 4
          %s293 = int_to_ptr.vmem [resolvable:$true] %s292
          %298 = dma.hbm_to_vmem [thread:$0]  %s291, 256, %s293, [#allocation5], 64, 64, 4
        $region28: #{tpu_custom_call.1} parent=11 // pred_fallthru
          _
        // Predicated region
        $region29: #{tpu_custom_call.1} parent=11 // pred_check
          %p299 = pneg %p191
        $region30: #{tpu_custom_call.1} parent=11 // pred_check_branch
          %301 = sbr.rel (%p299) target = $region32
        $region31: #{tpu_custom_call.1} parent=11 // pred_region
          _
        $region32: #{tpu_custom_call.1} parent=11 // pred_fallthru
          _
        // Predicated region
        $region33: #{tpu_custom_call.1} parent=11 // pred_check
          %p302 = pneg %p212
        $region34: #{tpu_custom_call.1} parent=11 // pred_check_branch
          %304 = sbr.rel (%p302) target = $region36
        $region35: #{tpu_custom_call.1} parent=11 // pred_region
          _
        $region36: #{tpu_custom_call.1} parent=11 // pred_fallthru
          _
        // Predicated region
        $region37: #{tpu_custom_call.1} parent=11 // pred_check
          %p305 = pneg %p233
        $region38: #{tpu_custom_call.1} parent=11 // pred_check_branch
          %307 = sbr.rel (%p305) target = $region40
        $region39: #{tpu_custom_call.1} parent=11 // pred_region
          %309 = vsyncadd [#allocation8], 0
          %s311 = sshll.u32 %s8, 4
          %s312 = int_to_ptr.hbm [resolvable:$true] %s311
          %s313 = sshll.u32 [#allocation7], 4
          %s314 = int_to_ptr.vmem [resolvable:$true] %s313
          %316 = dma.hbm_to_vmem [thread:$0]  %s312, 128, %s314, [#allocation8]
        $region40: #{tpu_custom_call.1} parent=11 // pred_fallthru
          _
      $region12: #{tpu_custom_call.1} parent=5 // pred_fallthru
        _
      %p317 = scmp.lt.s32.totalorder %s20, 2
      // Predicated region
      $region41: #{tpu_custom_call.1} parent=5 // pred_check
        %p318 = pneg %p317
      $region42: #{tpu_custom_call.1} parent=5 // pred_check_branch
        %320 = sbr.rel (%p318) target = $region44
      $region43: #{tpu_custom_call.1} parent=5 // pred_region
        // Predicated region
        $region45: #{tpu_custom_call.1} parent=43 // pred_check
          %p321 = pneg %p54
        $region46: #{tpu_custom_call.1} parent=43 // pred_check_branch
          %323 = sbr.rel (%p321) target = $region48
        $region47: #{tpu_custom_call.1} parent=43 // pred_region
          %p324 = scmp.lt.s32.totalorder %s27, 1
          %s325 = scalar_select %p324, %s27, 1
          %p326 = scmp.lt.s32.totalorder %s28, 0
          %s327 = scalar_select %p326, %s28, 0
          %s328 = sadd.s32 %s327, %s325
          %s329 = smul.addr %s328, 8
          %s330 = scalar_lea.vmem %s0, %s329
        $region48: #{tpu_custom_call.1} parent=43 // pred_fallthru
          _
        // Predicated region
        $region49: #{tpu_custom_call.1} parent=43 // pred_check
          %p331 = pneg %p80
        $region50: #{tpu_custom_call.1} parent=43 // pred_check_branch
          %333 = sbr.rel (%p331) target = $region52
        $region51: #{tpu_custom_call.1} parent=43 // pred_region
          %p334 = scmp.lt.s32.totalorder %s27, 1
          %s335 = scalar_select %p334, %s27, 1
          %s336 = smul.addr %s335, 8
          %s337 = scalar_lea.vmem %s1, %s336
        $region52: #{tpu_custom_call.1} parent=43 // pred_fallthru
          _
      $region44: #{tpu_custom_call.1} parent=5 // pred_fallthru
        _
      %p338 = scmp.le.s32.totalorder 1, %s20
      %p339 = scmp.lt.s32.totalorder %s20, 3
      %p340 = pnand %p338, %p339
      %p341 = pneg %p340
      // Predicated region
      $region53: #{tpu_custom_call.1} parent=5 // pred_check
        _
      $region54: #{tpu_custom_call.1} parent=5 // pred_check_branch
        %343 = sbr.rel (%p340) target = $region56
      $region55: #{tpu_custom_call.1} parent=5 // pred_region
        %s344 = ssub.s32 %s20, 1
        // Predicated region
        $region57: #{tpu_custom_call.1} parent=55 // pred_check
          %p345 = pneg %p170
        $region58: #{tpu_custom_call.1} parent=55 // pred_check_branch
          %347 = sbr.rel (%p345) target = $region60
        $region59: #{tpu_custom_call.1} parent=55 // pred_region
          %349 = dma.done [#allocation5], 256
        $region60: #{tpu_custom_call.1} parent=55 // pred_fallthru
          _
        // Predicated region
        $region61: #{tpu_custom_call.1} parent=55 // pred_check
          %p350 = pneg %p233
        $region62: #{tpu_custom_call.1} parent=55 // pred_check_branch
          %352 = sbr.rel (%p350) target = $region64
        $region63: #{tpu_custom_call.1} parent=55 // pred_region
          %354 = dma.done [#allocation8], 128
        $region64: #{tpu_custom_call.1} parent=55 // pred_fallthru
          _
        %p355 = scmp.lt.s32.totalorder %s29, 1
        %s356 = scalar_select %p355, %s29, 1
        %p357 = scmp.lt.s32.totalorder %s30, 0
        %s358 = scalar_select %p357, %s30, 0
        %s359 = sadd.s32 %s358, %s356
        %s360 = smul.addr %s359, 8
        %s361 = scalar_lea.vmem %s0, %s360
        %p362 = pneg %p60
        %p363 = pneg %p57
        %p364 = scmp.lt.s32.totalorder %s29, 1
        %s365 = scalar_select %p364, %s29, 1
        %s366 = smul.addr %s365, 8
        %s367 = scalar_lea.vmem %s1, %s366
        %p368 = pneg %p86
        %p369 = pneg %p83
        %p370 = pneg %p107
        %p371 = pneg %p104
        %p372 = pneg %p128
        %p373 = pneg %p125
        %p374 = pneg %p149
        %p375 = pneg %p146
        %p376 = pneg %p170
        %p377 = pneg %p167
        %p378 = pneg %p191
        %p379 = pneg %p188
        %p380 = pneg %p212
        %p381 = pneg %p209
        %p382 = pneg %p233
        %p383 = pneg %p230
        %p384 = pneg %p261
        %p385 = pneg %p258
        %s386 = sand.u32 %s248, 1
        %s387 = scalar_lea.sflag [#allocation6], %s386
        %s388 = sand.u32 %s248, 1
        %s389 = smul.addr %s388, 8
        %s390 = scalar_lea.vmem [#allocation9], %s389
        %p391 = scmp.lt.s32.totalorder %s29, 1
        %s392 = scalar_select %p391, %s29, 1
        %p393 = scmp.lt.s32.totalorder %s30, 0
        %s394 = scalar_select %p393, %s30, 0
        %s395 = sadd.s32 %s394, %s392
        %s396 = smul.addr %s395, 8
        %s397 = scalar_lea.vmem %s0, %s396
        %p398 = scmp.lt.s32.totalorder %s29, 1
        %s399 = scalar_select %p398, %s29, 1
        %s400 = smul.addr %s399, 8
        %s401 = scalar_lea.vmem %s1, %s400
        %v403 = vld [vmem:[#allocation7] sm:$0xff]
        %p404 = scmp.eq.s32.totalorder %s30, 0
        // Predicated region
        $region65: #{tpu_custom_call.1} parent=55 // pred_check
          %p405 = pneg %p404
        $region66: #{tpu_custom_call.1} parent=55 // pred_check_branch
          %407 = sbr.rel (%p405) target = $region68
        $region67: #{tpu_custom_call.1} parent=55 // pred_region
          %v408 = vld [vmem:[%s401] sm:$0xff]
          %vm409 = vcmask 261120
          %v410 = vsel %vm409, %v408, 0.0
          %411 = vadd.xlane.f32.xlu0 %v410
          %v412 = vpop.xlane.xlu0 %411
          %v413 = vrcp.pop 32.0
          %v414 = vmul.f32 32.0, %v413
          %v415 = vsub.f32 1.0, %v414
          %v416 = vmul.f32 %v413, %v415
          %v417 = vadd.f32 %v413, %v416
          %vm418 = vweird.f32 %v413
          %v419 = vsel %vm418, %v413, %v417
          %v420 = vmul.f32 %v412, %v419
          %v421 = vsub.f32 %v408, %v420
          %v422 = vmul.f32 %v421, %v421
          %v423 = vsel %vm409, %v422, 0.0
          %424 = vadd.xlane.f32.xlu0 %v423
          %v425 = vpop.xlane.xlu0 %424
          %v426 = vmul.f32 %v425, %v419
          %v427 = vadd.f32 %v426, 1e-05
          %v428 = vrsqrt.pop %v427
          %v429 = vmul.f32 %v428, %v427
          %v430 = vmul.f32 %v429, %v428
          %v431 = vmul.f32 0.5, %v430
          %v432 = vsub.f32 1.5, %v431
          %v433 = vmul.f32 %v428, %v432
          %vm434 = vweird.f32 %v427
          %vm435 = vweird.f32 %v428
          %vm436 = vmor %vm434, %vm435
          %v437 = vsel %vm436, %v428, %v433
          %v438 = vmul.f32 %v421, %v437
          %v439 = vperm.slane %v403, 0
          %v440 = vmul.f32 %v438, %v439
          %v441 = vperm.slane %v403, 1
          %v442 = vadd.f32 %v440, %v441
          %v443 = vpack.c.bf16 %v442, %v442
          %v444 = vld [vmem:[%s3] sm:$0xf]
          %v445 = vld [vmem:[%s3 + $0x4] sm:$0xf]
          %v446 = vld [vmem:[%s3 + $0x8] sm:$0xf]
          %v447 = vld [vmem:[%s3 + $0xc] sm:$0xf]
          %v452 = vunpack.c.l.b16 %v444
          %v453 = vunpack.c.l.b16 %v445
          %v454 = vunpack.c.l.b16 %v446
          %v455 = vunpack.c.l.b16 %v447
          %v456 = vpack.c.b16 %v453, %v452
          %v457 = vpack.c.b16 %v455, %v454
          %v461 = vsel %vm409, %v443, 0
          %463 = vmatpush.bf16.msra.mxu0 0
          %464 = vmatpush.bf16.msra.mxu0 0
          %465 = vmatpush.bf16.msra.mxu0 0
          %466 = vmatpush.bf16.msra.mxu0 0
          %467 = vmatpush.bf16.msra.mxu0 0
          %468 = vmatpush.bf16.msra.mxu0 0
          %469 = vmatpush.bf16.msra.mxu0 %v457
          %470 = vmatpush.bf16.msra.mxu0 %v456
          %471 = vmatmul.bf16.gmra.mxu0 %v461
          %v472 = vpop.f32.mrf.mxu0
          %v473 = vadd.f32 0.0, %v472
          %v474 = vpop.f32.mrf.mxu0
          %475 = vdwg.mxu0
          %477 = vrot.lane.b32.xlu0 %v473, 120
          %v478 = vpop.permute.xlu0 %477
          %480 = vrot.lane.b32.xlu0 %v473, 112
          %v481 = vpop.permute.xlu0 %480
          %483 = vrot.lane.b32.xlu0 %v473, 104
          %v484 = vpop.permute.xlu0 %483
          %v486 = vrot.slane %v481, 4
          %vm487 = vcmask 1047556
          %v488 = vsel %vm487, %v486, %v473
          %v489 = vrot.slane %v473, 4
          %v490 = vsel %vm487, %v481, %v489
          %v492 = vunpack.c.l.s4 1983009808
          %v493 = vunpack.c.0.s8 %v492
          %v494 = vperm.slane %v488, %v493
          %v496 = vunpack.c.l.s4 1983009808
          %v497 = vunpack.c.0.s8 %v496
          %v498 = vperm.slane %v490, %v497
          %v499 = vrot.slane %v484, 4
          %v500 = vsel %vm487, %v499, %v478
          %v501 = vrot.slane %v478, 4
          %v502 = vsel %vm487, %v484, %v501
          %v504 = vunpack.c.l.s4 1983009808
          %v505 = vunpack.c.0.s8 %v504
          %v506 = vperm.slane %v500, %v505
          %v508 = vunpack.c.l.s4 1983009808
          %v509 = vunpack.c.0.s8 %v508
          %v510 = vperm.slane %v502, %v509
          %v511 = vrot.slane %v506, 4
          %v512 = vsel %vm487, %v511, %v494
          %v513 = vrot.slane %v494, 4
          %v514 = vsel %vm487, %v506, %v513
          %v516 = vunpack.c.l.s4 1934713408
          %v517 = vunpack.c.0.s8 %v516
          %v518 = vperm.slane %v512, %v517
          %v520 = vunpack.c.l.s4 1934713408
          %v521 = vunpack.c.0.s8 %v520
          %v522 = vperm.slane %v514, %v521
          %v523 = vrot.slane %v510, 4
          %v524 = vsel %vm487, %v523, %v498
          %v525 = vrot.slane %v498, 4
          %v526 = vsel %vm487, %v510, %v525
          %v528 = vunpack.c.l.s4 1934713408
          %v529 = vunpack.c.0.s8 %v528
          %v530 = vperm.slane %v524, %v529
          %v532 = vunpack.c.l.s4 1934713408
          %v533 = vunpack.c.0.s8 %v532
          %v534 = vperm.slane %v526, %v533
          %v535 = vrot.slane %v518, 4
          %v536 = vsel %vm487, 0.0, %v535
          %v537 = vrot.slane %v522, 4
          %v538 = vsel %vm487, 0.0, %v537
          %v539 = vrot.slane %v530, 4
          %v540 = vsel %vm487, 0.0, %v539
          %v541 = vrot.slane %v534, 4
          %v542 = vsel %vm487, 0.0, %v541
          %543 = vrot.lane.b32.xlu0 %v473, 96
          %v544 = vpop.permute.xlu0 %543
          %545 = vrot.lane.b32.xlu0 %v478, 96
          %v546 = vpop.permute.xlu0 %545
          %547 = vrot.lane.b32.xlu0 %v481, 96
          %v548 = vpop.permute.xlu0 %547
          %549 = vrot.lane.b32.xlu0 %v484, 96
          %v550 = vpop.permute.xlu0 %549
          %v555 = vrot.slane %v548, 4
          %v556 = vsel %vm487, %v555, %v544
          %v557 = vrot.slane %v544, 4
          %v558 = vsel %vm487, %v548, %v557
          %v560 = vunpack.c.l.s4 1983009808
          %v561 = vunpack.c.0.s8 %v560
          %v562 = vperm.slane %v556, %v561
          %v564 = vunpack.c.l.s4 1983009808
          %v565 = vunpack.c.0.s8 %v564
          %v566 = vperm.slane %v558, %v565
          %v567 = vrot.slane %v550, 4
          %v568 = vsel %vm487, %v567, %v546
          %v569 = vrot.slane %v546, 4
          %v570 = vsel %vm487, %v550, %v569
          %v572 = vunpack.c.l.s4 1983009808
          %v573 = vunpack.c.0.s8 %v572
          %v574 = vperm.slane %v568, %v573
          %v576 = vunpack.c.l.s4 1983009808
          %v577 = vunpack.c.0.s8 %v576
          %v578 = vperm.slane %v570, %v577
          %v579 = vrot.slane %v574, 4
          %v580 = vsel %vm487, %v579, %v562
          %v581 = vrot.slane %v562, 4
          %v582 = vsel %vm487, %v574, %v581
          %v584 = vunpack.c.l.s4 1934713408
          %v585 = vunpack.c.0.s8 %v584
          %v586 = vperm.slane %v580, %v585
          %v588 = vunpack.c.l.s4 1934713408
          %v589 = vunpack.c.0.s8 %v588
          %v590 = vperm.slane %v582, %v589
          %v591 = vrot.slane %v578, 4
          %v592 = vsel %vm487, %v591, %v566
          %v593 = vrot.slane %v566, 4
          %v594 = vsel %vm487, %v578, %v593
          %v596 = vunpack.c.l.s4 1934713408
          %v597 = vunpack.c.0.s8 %v596
          %v598 = vperm.slane %v592, %v597
          %v600 = vunpack.c.l.s4 1934713408
          %v601 = vunpack.c.0.s8 %v600
          %v602 = vperm.slane %v594, %v601
          %v603 = vrot.slane %v586, 4
          %v604 = vsel %vm487, 0.0, %v603
          %v605 = vrot.slane %v590, 4
          %v606 = vsel %vm487, 0.0, %v605
          %v607 = vrot.slane %v598, 4
          %v608 = vsel %vm487, 0.0, %v607
          %v609 = vrot.slane %v602, 4
          %v610 = vsel %vm487, 0.0, %v609
          %v611 = vsel %vm487, %v537, %v518
          %v613 = vunpack.c.l.s4 1983009808
          %v614 = vunpack.c.0.s8 %v613
          %v615 = vperm.slane %v611, %v614
          %v616 = vrot.slane %v538, 4
          %v617 = vsel %vm487, %v616, %v536
          %v619 = vunpack.c.l.s4 1983009808
          %v620 = vunpack.c.0.s8 %v619
          %v621 = vperm.slane %v617, %v620
          %v622 = vsel %vm487, %v541, %v530
          %v624 = vunpack.c.l.s4 1983009808
          %v625 = vunpack.c.0.s8 %v624
          %v626 = vperm.slane %v622, %v625
          %v627 = vrot.slane %v542, 4
          %v628 = vsel %vm487, %v627, %v540
          %v630 = vunpack.c.l.s4 1983009808
          %v631 = vunpack.c.0.s8 %v630
          %v632 = vperm.slane %v628, %v631
          %v633 = vrot.slane %v621, 4
          %v634 = vsel %vm487, %v633, %v615
          %v635 = vrot.slane %v615, 4
          %v636 = vsel %vm487, %v621, %v635
          %v638 = vunpack.c.l.s4 1934713408
          %v639 = vunpack.c.0.s8 %v638
          %v640 = vperm.slane %v634, %v639
          %v642 = vunpack.c.l.s4 1934713408
          %v643 = vunpack.c.0.s8 %v642
          %v644 = vperm.slane %v636, %v643
          %v645 = vrot.slane %v632, 4
          %v646 = vsel %vm487, %v645, %v626
          %v647 = vrot.slane %v626, 4
          %v648 = vsel %vm487, %v632, %v647
          %v650 = vunpack.c.l.s4 1934713408
          %v651 = vunpack.c.0.s8 %v650
          %v652 = vperm.slane %v646, %v651
          %v654 = vunpack.c.l.s4 1934713408
          %v655 = vunpack.c.0.s8 %v654
          %v656 = vperm.slane %v648, %v655
          %v657 = vrot.slane %v652, 4
          %v658 = vsel %vm487, %v657, %v640
          %v659 = vrot.slane %v640, 4
          %v660 = vsel %vm487, %v652, %v659
          %v661 = vrot.slane %v656, 4
          %v662 = vsel %vm487, %v661, %v644
          %v663 = vrot.slane %v644, 4
          %v664 = vsel %vm487, %v656, %v663
          %v665 = vpack.c.bf16 %v658, %v658
          %v666 = vpack.c.bf16 %v660, %v660
          %v667 = vpack.c.bf16 %v662, %v662
          %v668 = vpack.c.bf16 %v664, %v664
          %vm669 = vcmask 60416
          %670 = vst.msk [vmem:[#allocation2] sm:$0xf] %vm669, %v665
          %671 = vst.msk [vmem:[#allocation2 + $0x4] sm:$0xf] %vm669, %v666
          %672 = vst.msk [vmem:[#allocation2 + $0x8] sm:$0xf] %vm669, %v667
          %673 = vst.msk [vmem:[#allocation2 + $0xc] sm:$0xf] %vm669, %v668
          %v674 = vsel %vm487, %v605, %v586
          %v676 = vunpack.c.l.s4 1983009808
          %v677 = vunpack.c.0.s8 %v676
          %v678 = vperm.slane %v674, %v677
          %v679 = vrot.slane %v606, 4
          %v680 = vsel %vm487, %v679, %v604
          %v682 = vunpack.c.l.s4 1983009808
          %v683 = vunpack.c.0.s8 %v682
          %v684 = vperm.slane %v680, %v683
          %v685 = vsel %vm487, %v609, %v598
          %v687 = vunpack.c.l.s4 1983009808
          %v688 = vunpack.c.0.s8 %v687
          %v689 = vperm.slane %v685, %v688
          %v690 = vrot.slane %v610, 4
          %v691 = vsel %vm487, %v690, %v608
          %v693 = vunpack.c.l.s4 1983009808
          %v694 = vunpack.c.0.s8 %v693
          %v695 = vperm.slane %v691, %v694
          %v696 = vrot.slane %v684, 4
          %v697 = vsel %vm487, %v696, %v678
          %v698 = vrot.slane %v678, 4
          %v699 = vsel %vm487, %v684, %v698
          %v701 = vunpack.c.l.s4 1934713408
          %v702 = vunpack.c.0.s8 %v701
          %v703 = vperm.slane %v697, %v702
          %v705 = vunpack.c.l.s4 1934713408
          %v706 = vunpack.c.0.s8 %v705
          %v707 = vperm.slane %v699, %v706
          %v708 = vrot.slane %v695, 4
          %v709 = vsel %vm487, %v708, %v689
          %v710 = vrot.slane %v689, 4
          %v711 = vsel %vm487, %v695, %v710
          %v713 = vunpack.c.l.s4 1934713408
          %v714 = vunpack.c.0.s8 %v713
          %v715 = vperm.slane %v709, %v714
          %v717 = vunpack.c.l.s4 1934713408
          %v718 = vunpack.c.0.s8 %v717
          %v719 = vperm.slane %v711, %v718
          %v720 = vrot.slane %v715, 4
          %v721 = vsel %vm487, %v720, %v703
          %v722 = vrot.slane %v703, 4
          %v723 = vsel %vm487, %v715, %v722
          %v724 = vrot.slane %v719, 4
          %v725 = vsel %vm487, %v724, %v707
          %v726 = vrot.slane %v707, 4
          %v727 = vsel %vm487, %v719, %v726
          %v728 = vpack.c.bf16 %v721, %v721
          %v729 = vpack.c.bf16 %v723, %v723
          %v730 = vpack.c.bf16 %v725, %v725
          %v731 = vpack.c.bf16 %v727, %v727
          %732 = vst.msk [vmem:[#allocation3] sm:$0xf] %vm669, %v728
          %733 = vst.msk [vmem:[#allocation3 + $0x4] sm:$0xf] %vm669, %v729
          %734 = vst.msk [vmem:[#allocation3 + $0x8] sm:$0xf] %vm669, %v730
          %735 = vst.msk [vmem:[#allocation3 + $0xc] sm:$0xf] %vm669, %v731
        $region68: #{tpu_custom_call.1} parent=55 // pred_fallthru
          _
        %v736 = vld [vmem:[%s397] sm:$0xff]
        %vm737 = vcmask 261120
        %v738 = vsel %vm737, %v736, 0.0
        %739 = vadd.xlane.f32.xlu0 %v738
        %v740 = vpop.xlane.xlu0 %739
        %v741 = vrcp.pop 32.0
        %v742 = vmul.f32 32.0, %v741
        %v743 = vsub.f32 1.0, %v742
        %v744 = vmul.f32 %v741, %v743
        %v745 = vadd.f32 %v741, %v744
        %vm746 = vweird.f32 %v741
        %v747 = vsel %vm746, %v741, %v745
        %v748 = vmul.f32 %v740, %v747
        %v749 = vsub.f32 %v736, %v748
        %v750 = vmul.f32 %v749, %v749
        %v751 = vsel %vm737, %v750, 0.0
        %752 = vadd.xlane.f32.xlu0 %v751
        %v753 = vpop.xlane.xlu0 %752
        %v754 = vmul.f32 %v753, %v747
        %v755 = vadd.f32 %v754, 1e-05
        %v756 = vrsqrt.pop %v755
        %v757 = vmul.f32 %v756, %v755
        %v758 = vmul.f32 %v757, %v756
        %v759 = vmul.f32 0.5, %v758
        %v760 = vsub.f32 1.5, %v759
        %v761 = vmul.f32 %v756, %v760
        %vm762 = vweird.f32 %v755
        %vm763 = vweird.f32 %v756
        %vm764 = vmor %vm762, %vm763
        %v765 = vsel %vm764, %v756, %v761
        %v766 = vmul.f32 %v749, %v765
        %v767 = vperm.slane %v403, 0
        %v768 = vmul.f32 %v766, %v767
        %v769 = vperm.slane %v403, 1
        %v770 = vadd.f32 %v768, %v769
        %v771 = vpack.c.bf16 %v770, %v770
        %v772 = vld [vmem:[%s2] sm:$0xf]
        %v773 = vld [vmem:[%s2 + $0x4] sm:$0xf]
        %v774 = vld [vmem:[%s2 + $0x8] sm:$0xf]
        %v775 = vld [vmem:[%s2 + $0xc] sm:$0xf]
        %v780 = vunpack.c.l.b16 %v772
        %v781 = vunpack.c.l.b16 %v773
        %v782 = vunpack.c.l.b16 %v774
        %v783 = vunpack.c.l.b16 %v775
        %v784 = vpack.c.b16 %v781, %v780
        %v785 = vpack.c.b16 %v783, %v782
        %v789 = vsel %vm737, %v771, 0
        %791 = vmatpush.bf16.msra.mxu0 0
        %792 = vmatpush.bf16.msra.mxu0 0
        %793 = vmatpush.bf16.msra.mxu0 0
        %794 = vmatpush.bf16.msra.mxu0 0
        %795 = vmatpush.bf16.msra.mxu0 0
        %796 = vmatpush.bf16.msra.mxu0 0
        %797 = vmatpush.bf16.msra.mxu0 %v785
        %798 = vmatpush.bf16.msra.mxu0 %v784
        %799 = vmatmul.bf16.gmra.mxu0 %v789
        %v800 = vpop.f32.mrf.mxu0
        %v801 = vadd.f32 0.0, %v800
        %v802 = vpop.f32.mrf.mxu0
        %803 = vdwg.mxu0
        %805 = vrot.lane.b32.xlu0 %v801, 120
        %v806 = vpop.permute.xlu0 %805
        %808 = vrot.lane.b32.xlu0 %v801, 112
        %v809 = vpop.permute.xlu0 %808
        %811 = vrot.lane.b32.xlu0 %v801, 104
        %v812 = vpop.permute.xlu0 %811
        %v814 = vrot.slane %v809, 4
        %vm815 = vcmask 1047556
        %v816 = vsel %vm815, %v814, %v801
        %v817 = vrot.slane %v801, 4
        %v818 = vsel %vm815, %v809, %v817
        %v820 = vunpack.c.l.s4 1983009808
        %v821 = vunpack.c.0.s8 %v820
        %v822 = vperm.slane %v816, %v821
        %v824 = vunpack.c.l.s4 1983009808
        %v825 = vunpack.c.0.s8 %v824
        %v826 = vperm.slane %v818, %v825
        %v827 = vrot.slane %v812, 4
        %v828 = vsel %vm815, %v827, %v806
        %v829 = vrot.slane %v806, 4
        %v830 = vsel %vm815, %v812, %v829
        %v832 = vunpack.c.l.s4 1983009808
        %v833 = vunpack.c.0.s8 %v832
        %v834 = vperm.slane %v828, %v833
        %v836 = vunpack.c.l.s4 1983009808
        %v837 = vunpack.c.0.s8 %v836
        %v838 = vperm.slane %v830, %v837
        %v839 = vrot.slane %v834, 4
        %v840 = vsel %vm815, %v839, %v822
        %v841 = vrot.slane %v822, 4
        %v842 = vsel %vm815, %v834, %v841
        %v844 = vunpack.c.l.s4 1934713408
        %v845 = vunpack.c.0.s8 %v844
        %v846 = vperm.slane %v840, %v845
        %v848 = vunpack.c.l.s4 1934713408
        %v849 = vunpack.c.0.s8 %v848
        %v850 = vperm.slane %v842, %v849
        %v851 = vrot.slane %v838, 4
        %v852 = vsel %vm815, %v851, %v826
        %v853 = vrot.slane %v826, 4
        %v854 = vsel %vm815, %v838, %v853
        %v856 = vunpack.c.l.s4 1934713408
        %v857 = vunpack.c.0.s8 %v856
        %v858 = vperm.slane %v852, %v857
        %v860 = vunpack.c.l.s4 1934713408
        %v861 = vunpack.c.0.s8 %v860
        %v862 = vperm.slane %v854, %v861
        %v863 = vrot.slane %v846, 4
        %v864 = vsel %vm815, 0.0, %v863
        %v865 = vrot.slane %v850, 4
        %v866 = vsel %vm815, 0.0, %v865
        %v867 = vrot.slane %v858, 4
        %v868 = vsel %vm815, 0.0, %v867
        %v869 = vrot.slane %v862, 4
        %v870 = vsel %vm815, 0.0, %v869
        %v871 = vsel %vm815, %v865, %v846
        %v873 = vunpack.c.l.s4 1983009808
        %v874 = vunpack.c.0.s8 %v873
        %v875 = vperm.slane %v871, %v874
        %v876 = vrot.slane %v866, 4
        %v877 = vsel %vm815, %v876, %v864
        %v879 = vunpack.c.l.s4 1983009808
        %v880 = vunpack.c.0.s8 %v879
        %v881 = vperm.slane %v877, %v880
        %v882 = vsel %vm815, %v869, %v858
        %v884 = vunpack.c.l.s4 1983009808
        %v885 = vunpack.c.0.s8 %v884
        %v886 = vperm.slane %v882, %v885
        %v887 = vrot.slane %v870, 4
        %v888 = vsel %vm815, %v887, %v868
        %v890 = vunpack.c.l.s4 1983009808
        %v891 = vunpack.c.0.s8 %v890
        %v892 = vperm.slane %v888, %v891
        %v893 = vrot.slane %v881, 4
        %v894 = vsel %vm815, %v893, %v875
        %v895 = vrot.slane %v875, 4
        %v896 = vsel %vm815, %v881, %v895
        %v898 = vunpack.c.l.s4 1934713408
        %v899 = vunpack.c.0.s8 %v898
        %v900 = vperm.slane %v894, %v899
        %v902 = vunpack.c.l.s4 1934713408
        %v903 = vunpack.c.0.s8 %v902
        %v904 = vperm.slane %v896, %v903
        %v905 = vrot.slane %v892, 4
        %v906 = vsel %vm815, %v905, %v886
        %v907 = vrot.slane %v886, 4
        %v908 = vsel %vm815, %v892, %v907
        %v910 = vunpack.c.l.s4 1934713408
        %v911 = vunpack.c.0.s8 %v910
        %v912 = vperm.slane %v906, %v911
        %v914 = vunpack.c.l.s4 1934713408
        %v915 = vunpack.c.0.s8 %v914
        %v916 = vperm.slane %v908, %v915
        %v917 = vrot.slane %v912, 4
        %v918 = vsel %vm815, %v917, %v900
        %v919 = vrot.slane %v900, 4
        %v920 = vsel %vm815, %v912, %v919
        %v921 = vrot.slane %v916, 4
        %v922 = vsel %vm815, %v921, %v904
        %v923 = vrot.slane %v904, 4
        %v924 = vsel %vm815, %v916, %v923
        %v925 = vpack.c.bf16 %v918, %v918
        %v926 = vpack.c.bf16 %v920, %v920
        %v927 = vpack.c.bf16 %v922, %v922
        %v928 = vpack.c.bf16 %v924, %v924
        %v929 = vld [vmem:[#allocation2] sm:$0xf]
        %v930 = vld [vmem:[#allocation2 + $0x4] sm:$0xf]
        %v931 = vld [vmem:[#allocation2 + $0x8] sm:$0xf]
        %v932 = vld [vmem:[#allocation2 + $0xc] sm:$0xf]
        %vm933 = vcmask 64512
        %v935 = vsel %vm933, %v925, 0
        %v938 = vsel %vm933, %v929, 0
        %940 = vmatpush.bf16.xpose.msra.mxu0 0
        %941 = vmatpush.bf16.xpose.msra.mxu0 0
        %942 = vmatpush.bf16.xpose.msra.mxu0 0
        %943 = vmatpush.bf16.xpose.msra.mxu0 0
        %944 = vmatpush.bf16.xpose.msra.mxu0 0
        %945 = vmatpush.bf16.xpose.msra.mxu0 0
        %946 = vmatpush.bf16.xpose.msra.mxu0 0
        %947 = vmatpush.bf16.xpose.msra.mxu0 %v938
        %948 = vmatmul.bf16.gmra.mxu0 %v935
        %v949 = vpop.f32.mrf.mxu0
        %v950 = vadd.f32 0.0, %v949
        %v951 = vpop.f32.mrf.mxu0
        %952 = vdwg.mxu0
        %v954 = vsel %vm933, %v926, 0
        %v957 = vsel %vm933, %v930, 0
        %959 = vmatpush.bf16.xpose.msra.mxu0 0
        %960 = vmatpush.bf16.xpose.msra.mxu0 0
        %961 = vmatpush.bf16.xpose.msra.mxu0 0
        %962 = vmatpush.bf16.xpose.msra.mxu0 0
        %963 = vmatpush.bf16.xpose.msra.mxu0 0
        %964 = vmatpush.bf16.xpose.msra.mxu0 0
        %965 = vmatpush.bf16.xpose.msra.mxu0 0
        %966 = vmatpush.bf16.xpose.msra.mxu0 %v957
        %967 = vmatmul.bf16.gmra.mxu0 %v954
        %v968 = vpop.f32.mrf.mxu0
        %v969 = vadd.f32 0.0, %v968
        %v970 = vpop.f32.mrf.mxu0
        %971 = vdwg.mxu0
        %v973 = vsel %vm933, %v927, 0
        %v976 = vsel %vm933, %v931, 0
        %978 = vmatpush.bf16.xpose.msra.mxu0 0
        %979 = vmatpush.bf16.xpose.msra.mxu0 0
        %980 = vmatpush.bf16.xpose.msra.mxu0 0
        %981 = vmatpush.bf16.xpose.msra.mxu0 0
        %982 = vmatpush.bf16.xpose.msra.mxu0 0
        %983 = vmatpush.bf16.xpose.msra.mxu0 0
        %984 = vmatpush.bf16.xpose.msra.mxu0 0
        %985 = vmatpush.bf16.xpose.msra.mxu0 %v976
        %986 = vmatmul.bf16.gmra.mxu0 %v973
        %v987 = vpop.f32.mrf.mxu0
        %v988 = vadd.f32 0.0, %v987
        %v989 = vpop.f32.mrf.mxu0
        %990 = vdwg.mxu0
        %v992 = vsel %vm933, %v928, 0
        %v995 = vsel %vm933, %v932, 0
        %997 = vmatpush.bf16.xpose.msra.mxu0 0
        %998 = vmatpush.bf16.xpose.msra.mxu0 0
        %999 = vmatpush.bf16.xpose.msra.mxu0 0
        %1000 = vmatpush.bf16.xpose.msra.mxu0 0
        %1001 = vmatpush.bf16.xpose.msra.mxu0 0
        %1002 = vmatpush.bf16.xpose.msra.mxu0 0
        %1003 = vmatpush.bf16.xpose.msra.mxu0 0
        %1004 = vmatpush.bf16.xpose.msra.mxu0 %v995
        %1005 = vmatmul.bf16.gmra.mxu0 %v992
        %v1006 = vpop.f32.mrf.mxu0
        %v1007 = vadd.f32 0.0, %v1006
        %v1008 = vpop.f32.mrf.mxu0
        %1009 = vdwg.mxu0
        %v1010 = vlaneseq
        %v1011 = vshrl.u32 %v1010, 7
        %s1012 = smul.u32 %s30, 8
        %v1013 = vstv %s1012
        %v1014 = vadd.s32 %v1011, %v1013
        %v1015 = vlaneseq
        %v1016 = vand.u32 %v1015, 127
        %vm1017 = vcmp.ge.s32.totalorder %v1014, %v1016
        %v1018 = vsel %vm1017, 1, 0
        %vm1019 = vcmp.eq.s32.totalorder %v1018, 1
        %v1020 = vsel %vm1019, %v950, -1e+30
        %v1021 = vsel %vm1019, %v969, -1e+30
        %v1022 = vsel %vm1019, %v988, -1e+30
        %v1023 = vsel %vm1019, %v1007, -1e+30
        %v1024 = vsel %vm933, %v1020, -inf
        %1025 = vmax.xlane.f32.xlu0 %v1024
        %v1026 = vpop.xlane.xlu0 %1025
        %v1027 = vsel %vm933, %v1021, -inf
        %1028 = vmax.xlane.f32.xlu0 %v1027
        %v1029 = vpop.xlane.xlu0 %1028
        %v1030 = vsel %vm933, %v1022, -inf
        %1031 = vmax.xlane.f32.xlu0 %v1030
        %v1032 = vpop.xlane.xlu0 %1031
        %v1033 = vsel %vm933, %v1023, -inf
        %1034 = vmax.xlane.f32.xlu0 %v1033
        %v1035 = vpop.xlane.xlu0 %1034
        %v1036 = vsub.f32 %v1020, %v1026
        %v1037 = vsub.f32 %v1021, %v1029
        %v1038 = vsub.f32 %v1022, %v1032
        %v1039 = vsub.f32 %v1023, %v1035
        %v1040 = vmul.f32 %v1036, 1.442695
        %v1041 = vpow.pop %v1040
        %v1042 = vmul.f32 %v1037, 1.442695
        %v1043 = vpow.pop %v1042
        %v1044 = vmul.f32 %v1038, 1.442695
        %v1045 = vpow.pop %v1044
        %v1046 = vmul.f32 %v1039, 1.442695
        %v1047 = vpow.pop %v1046
        %v1048 = vsel %vm933, %v1041, 0.0
        %1049 = vadd.xlane.f32.xlu0 %v1048
        %v1050 = vpop.xlane.xlu0 %1049
        %v1051 = vsel %vm933, %v1043, 0.0
        %1052 = vadd.xlane.f32.xlu0 %v1051
        %v1053 = vpop.xlane.xlu0 %1052
        %v1054 = vsel %vm933, %v1045, 0.0
        %1055 = vadd.xlane.f32.xlu0 %v1054
        %v1056 = vpop.xlane.xlu0 %1055
        %v1057 = vsel %vm933, %v1047, 0.0
        %1058 = vadd.xlane.f32.xlu0 %v1057
        %v1059 = vpop.xlane.xlu0 %1058
        %v1060 = vrcp.pop %v1050
        %v1061 = vrcp.pop %v1053
        %v1062 = vrcp.pop %v1056
        %v1063 = vrcp.pop %v1059
        %v1064 = vmul.f32 %v1041, %v1060
        %v1065 = vmul.f32 %v1043, %v1061
        %v1066 = vmul.f32 %v1045, %v1062
        %v1067 = vmul.f32 %v1047, %v1063
        %v1068 = vpack.c.bf16 %v1064, %v1064
        %v1069 = vpack.c.bf16 %v1065, %v1065
        %v1070 = vpack.c.bf16 %v1066, %v1066
        %v1071 = vpack.c.bf16 %v1067, %v1067
        %v1072 = vld [vmem:[#allocation3] sm:$0xf]
        %v1073 = vld [vmem:[#allocation3 + $0x4] sm:$0xf]
        %v1074 = vld [vmem:[#allocation3 + $0x8] sm:$0xf]
        %v1075 = vld [vmem:[#allocation3 + $0xc] sm:$0xf]
        %v1077 = vsel %vm933, %v1068, 0
        %vm1079 = vcmask 1043456
        %v1081 = vsel %vm1079, %v1072, 0
        %1083 = vmatpush.bf16.msra.mxu0 0
        %1084 = vmatpush.bf16.msra.mxu0 0
        %1085 = vmatpush.bf16.msra.mxu0 0
        %1086 = vmatpush.bf16.msra.mxu0 0
        %1087 = vmatpush.bf16.msra.mxu0 0
        %1088 = vmatpush.bf16.msra.mxu0 0
        %1089 = vmatpush.bf16.msra.mxu0 0
        %1090 = vmatpush.bf16.msra.mxu0 %v1081
        %1091 = vmatmul.bf16.gmra.mxu0 %v1077
        %v1092 = vpop.f32.mrf.mxu0
        %v1093 = vadd.f32 0.0, %v1092
        %v1094 = vpop.f32.mrf.mxu0
        %1095 = vdwg.mxu0
        %v1097 = vsel %vm933, %v1069, 0
        %v1100 = vsel %vm1079, %v1073, 0
        %1102 = vmatpush.bf16.msra.mxu0 0
        %1103 = vmatpush.bf16.msra.mxu0 0
        %1104 = vmatpush.bf16.msra.mxu0 0
        %1105 = vmatpush.bf16.msra.mxu0 0
        %1106 = vmatpush.bf16.msra.mxu0 0
        %1107 = vmatpush.bf16.msra.mxu0 0
        %1108 = vmatpush.bf16.msra.mxu0 0
        %1109 = vmatpush.bf16.msra.mxu0 %v1100
        %1110 = vmatmul.bf16.gmra.mxu0 %v1097
        %v1111 = vpop.f32.mrf.mxu0
        %v1112 = vadd.f32 0.0, %v1111
        %v1113 = vpop.f32.mrf.mxu0
        %1114 = vdwg.mxu0
        %v1116 = vsel %vm933, %v1070, 0
        %v1119 = vsel %vm1079, %v1074, 0
        %1121 = vmatpush.bf16.msra.mxu0 0
        %1122 = vmatpush.bf16.msra.mxu0 0
        %1123 = vmatpush.bf16.msra.mxu0 0
        %1124 = vmatpush.bf16.msra.mxu0 0
        %1125 = vmatpush.bf16.msra.mxu0 0
        %1126 = vmatpush.bf16.msra.mxu0 0
        %1127 = vmatpush.bf16.msra.mxu0 0
        %1128 = vmatpush.bf16.msra.mxu0 %v1119
        %1129 = vmatmul.bf16.gmra.mxu0 %v1116
        %v1130 = vpop.f32.mrf.mxu0
        %v1131 = vadd.f32 0.0, %v1130
        %v1132 = vpop.f32.mrf.mxu0
        %1133 = vdwg.mxu0
        %v1135 = vsel %vm933, %v1071, 0
        %v1138 = vsel %vm1079, %v1075, 0
        %1140 = vmatpush.bf16.msra.mxu0 0
        %1141 = vmatpush.bf16.msra.mxu0 0
        %1142 = vmatpush.bf16.msra.mxu0 0
        %1143 = vmatpush.bf16.msra.mxu0 0
        %1144 = vmatpush.bf16.msra.mxu0 0
        %1145 = vmatpush.bf16.msra.mxu0 0
        %1146 = vmatpush.bf16.msra.mxu0 0
        %1147 = vmatpush.bf16.msra.mxu0 %v1138
        %1148 = vmatmul.bf16.gmra.mxu0 %v1135
        %v1149 = vpop.f32.mrf.mxu0
        %v1150 = vadd.f32 0.0, %v1149
        %v1151 = vpop.f32.mrf.mxu0
        %1152 = vdwg.mxu0
        %v1153 = vpack.c.bf16 %v1093, %v1093
        %v1154 = vpack.c.bf16 %v1112, %v1112
        %v1155 = vpack.c.bf16 %v1131, %v1131
        %v1156 = vpack.c.bf16 %v1150, %v1150
        %v1157 = vld [vmem:[%s4] sm:$0xf]
        %v1158 = vld [vmem:[%s4 + $0x4] sm:$0xf]
        %v1159 = vld [vmem:[%s4 + $0x8] sm:$0xf]
        %v1160 = vld [vmem:[%s4 + $0xc] sm:$0xf]
        %v1162 = vsel %vm933, %v1153, 0
        %v1165 = vsel %vm1079, %v1157, 0
        %1167 = vmatpush.bf16.msra.mxu0 0
        %1168 = vmatpush.bf16.msra.mxu0 0
        %1169 = vmatpush.bf16.msra.mxu0 0
        %1170 = vmatpush.bf16.msra.mxu0 0
        %1171 = vmatpush.bf16.msra.mxu0 0
        %1172 = vmatpush.bf16.msra.mxu0 0
        %1173 = vmatpush.bf16.msra.mxu0 0
        %1174 = vmatpush.bf16.msra.mxu0 %v1165
        %1175 = vmatmul.bf16.gmra.mxu0 %v1162
        %v1176 = vpop.f32.mrf.mxu0
        %v1177 = vadd.f32 0.0, %v1176
        %v1178 = vpop.f32.mrf.mxu0
        %1179 = vdwg.mxu0
        %v1181 = vsel %vm933, %v1154, 0
        %v1184 = vsel %vm1079, %v1158, 0
        %1186 = vmatpush.bf16.msra.mxu0 0
        %1187 = vmatpush.bf16.msra.mxu0 0
        %1188 = vmatpush.bf16.msra.mxu0 0
        %1189 = vmatpush.bf16.msra.mxu0 0
        %1190 = vmatpush.bf16.msra.mxu0 0
        %1191 = vmatpush.bf16.msra.mxu0 0
        %1192 = vmatpush.bf16.msra.mxu0 0
        %1193 = vmatpush.bf16.msra.mxu0 %v1184
        %1194 = vmatmul.bf16.gmra.mxu0 %v1181
        %v1195 = vpop.f32.mrf.mxu0
        %v1196 = vadd.f32 0.0, %v1195
        %v1197 = vpop.f32.mrf.mxu0
        %1198 = vdwg.mxu0
        %v1200 = vsel %vm933, %v1155, 0
        %v1203 = vsel %vm1079, %v1159, 0
        %1205 = vmatpush.bf16.msra.mxu0 0
        %1206 = vmatpush.bf16.msra.mxu0 0
        %1207 = vmatpush.bf16.msra.mxu0 0
        %1208 = vmatpush.bf16.msra.mxu0 0
        %1209 = vmatpush.bf16.msra.mxu0 0
        %1210 = vmatpush.bf16.msra.mxu0 0
        %1211 = vmatpush.bf16.msra.mxu0 0
        %1212 = vmatpush.bf16.msra.mxu0 %v1203
        %1213 = vmatmul.bf16.gmra.mxu0 %v1200
        %v1214 = vpop.f32.mrf.mxu0
        %v1215 = vadd.f32 0.0, %v1214
        %v1216 = vpop.f32.mrf.mxu0
        %1217 = vdwg.mxu0
        %v1219 = vsel %vm933, %v1156, 0
        %v1222 = vsel %vm1079, %v1160, 0
        %1224 = vmatpush.bf16.msra.mxu0 0
        %1225 = vmatpush.bf16.msra.mxu0 0
        %1226 = vmatpush.bf16.msra.mxu0 0
        %1227 = vmatpush.bf16.msra.mxu0 0
        %1228 = vmatpush.bf16.msra.mxu0 0
        %1229 = vmatpush.bf16.msra.mxu0 0
        %1230 = vmatpush.bf16.msra.mxu0 0
        %1231 = vmatpush.bf16.msra.mxu0 %v1222
        %1232 = vmatmul.bf16.gmra.mxu0 %v1219
        %v1233 = vpop.f32.mrf.mxu0
        %v1234 = vadd.f32 0.0, %v1233
        %v1235 = vpop.f32.mrf.mxu0
        %1236 = vdwg.mxu0
        %v1237 = vsel %vm737, %v1177, 0.0
        %v1238 = vsel %vm737, %v1196, 0.0
        %v1239 = vadd.f32 %v1237, %v1238
        %v1240 = vsel %vm737, %v1215, 0.0
        %v1241 = vadd.f32 %v1239, %v1240
        %v1242 = vsel %vm737, %v1234, 0.0
        %v1243 = vadd.f32 %v1241, %v1242
        %v1244 = vperm.slane %v403, 4
        %v1245 = vadd.f32 %v1243, %v1244
        %v1246 = vadd.f32 %v736, %v1245
        %v1247 = vsel %vm737, %v1246, 0.0
        %1248 = vadd.xlane.f32.xlu0 %v1247
        %v1249 = vpop.xlane.xlu0 %1248
        %v1250 = vmul.f32 %v1249, %v747
        %v1251 = vsub.f32 %v1246, %v1250
        %v1252 = vmul.f32 %v1251, %v1251
        %v1253 = vsel %vm737, %v1252, 0.0
        %1254 = vadd.xlane.f32.xlu0 %v1253
        %v1255 = vpop.xlane.xlu0 %1254
        %v1256 = vmul.f32 %v1255, %v747
        %v1257 = vadd.f32 %v1256, 1e-05
        %v1258 = vrsqrt.pop %v1257
        %v1259 = vmul.f32 %v1258, %v1257
        %v1260 = vmul.f32 %v1259, %v1258
        %v1261 = vmul.f32 0.5, %v1260
        %v1262 = vsub.f32 1.5, %v1261
        %v1263 = vmul.f32 %v1258, %v1262
        %vm1264 = vweird.f32 %v1257
        %vm1265 = vweird.f32 %v1258
        %vm1266 = vmor %vm1264, %vm1265
        %v1267 = vsel %vm1266, %v1258, %v1263
        %v1268 = vmul.f32 %v1251, %v1267
        %v1269 = vperm.slane %v403, 2
        %v1270 = vmul.f32 %v1268, %v1269
        %v1271 = vperm.slane %v403, 3
        %v1272 = vadd.f32 %v1270, %v1271
        %v1273 = vpack.c.bf16 %v1272, %v1272
        %v1274 = vld [vmem:[#allocation4] sm:$0xf]
        %v1275 = vld [vmem:[#allocation4 + $0x4] sm:$0xf]
        %v1276 = vld [vmem:[#allocation4 + $0x8] sm:$0xf]
        %v1277 = vld [vmem:[#allocation4 + $0xc] sm:$0xf]
        %v1278 = vld [vmem:[%s7] sm:$0x1]
        %v1280 = vperm.slane %v1278, 0
        %v1286 = vunpack.c.l.b16 %v1274
        %v1287 = vunpack.c.l.b16 %v1275
        %v1288 = vunpack.c.l.b16 %v1276
        %v1289 = vunpack.c.l.b16 %v1277
        %v1290 = vpack.c.b16 %v1287, %v1286
        %v1291 = vpack.c.b16 %v1289, %v1288
        %v1295 = vsel %vm737, %v1273, 0
        %1297 = vmatpush.bf16.msra.mxu0 0
        %1298 = vmatpush.bf16.msra.mxu0 0
        %1299 = vmatpush.bf16.msra.mxu0 0
        %1300 = vmatpush.bf16.msra.mxu0 0
        %1301 = vmatpush.bf16.msra.mxu0 0
        %1302 = vmatpush.bf16.msra.mxu0 0
        %1303 = vmatpush.bf16.msra.mxu0 %v1291
        %1304 = vmatpush.bf16.msra.mxu0 %v1290
        %1305 = vmatmul.bf16.gmra.mxu0 %v1295
        %v1306 = vpop.f32.mrf.mxu0
        %v1307 = vadd.f32 %v1280, %v1306
        %v1308 = vpop.f32.mrf.mxu0
        %1309 = vdwg.mxu0
        %v1310 = vmax.f32 %v1307, 0.0
        %v1311 = vpack.c.bf16 %v1310, %v1310
        %v1312 = vld [vmem:[%s6] sm:$0xf]
        %v1313 = vld [vmem:[%s6 + $0x4] sm:$0xf]
        %v1314 = vld [vmem:[%s6 + $0x8] sm:$0xf]
        %v1315 = vld [vmem:[%s6 + $0xc] sm:$0xf]
        %v1316 = vld [vmem:[%s6 + $0x10] sm:$0xf]
        %v1317 = vld [vmem:[%s6 + $0x14] sm:$0xf]
        %v1318 = vld [vmem:[%s6 + $0x18] sm:$0xf]
        %v1319 = vld [vmem:[%s6 + $0x1c] sm:$0xf]
        %v1320 = vld [vmem:[%s6 + $0x20] sm:$0xf]
        %v1321 = vld [vmem:[%s6 + $0x24] sm:$0xf]
        %v1322 = vld [vmem:[%s6 + $0x28] sm:$0xf]
        %v1323 = vld [vmem:[%s6 + $0x2c] sm:$0xf]
        %v1324 = vld [vmem:[%s6 + $0x30] sm:$0xf]
        %v1325 = vld [vmem:[%s6 + $0x34] sm:$0xf]
        %v1326 = vld [vmem:[%s6 + $0x38] sm:$0xf]
        %v1327 = vld [vmem:[%s6 + $0x3c] sm:$0xf]
        %v1328 = vperm.slane %v403, 5
        %v1345 = vunpack.c.l.b16 %v1312
        %v1346 = vunpack.c.l.b16 %v1313
        %v1347 = vunpack.c.l.b16 %v1314
        %v1348 = vunpack.c.l.b16 %v1315
        %v1349 = vunpack.c.l.b16 %v1316
        %v1350 = vunpack.c.l.b16 %v1317
        %v1351 = vunpack.c.l.b16 %v1318
        %v1352 = vunpack.c.l.b16 %v1319
        %v1353 = vunpack.c.l.b16 %v1320
        %v1354 = vunpack.c.l.b16 %v1321
        %v1355 = vunpack.c.l.b16 %v1322
        %v1356 = vunpack.c.l.b16 %v1323
        %v1357 = vunpack.c.l.b16 %v1324
        %v1358 = vunpack.c.l.b16 %v1325
        %v1359 = vunpack.c.l.b16 %v1326
        %v1360 = vunpack.c.l.b16 %v1327
        %v1361 = vpack.c.b16 %v1346, %v1345
        %v1362 = vpack.c.b16 %v1348, %v1347
        %v1363 = vpack.c.b16 %v1350, %v1349
        %v1364 = vpack.c.b16 %v1352, %v1351
        %v1365 = vpack.c.b16 %v1354, %v1353
        %v1366 = vpack.c.b16 %v1356, %v1355
        %v1367 = vpack.c.b16 %v1358, %v1357
        %v1368 = vpack.c.b16 %v1360, %v1359
        %1377 = vmatpush.bf16.msra.mxu0 %v1368
        %1378 = vmatpush.bf16.msra.mxu0 %v1367
        %1379 = vmatpush.bf16.msra.mxu0 %v1366
        %1380 = vmatpush.bf16.msra.mxu0 %v1365
        %1381 = vmatpush.bf16.msra.mxu0 %v1364
        %1382 = vmatpush.bf16.msra.mxu0 %v1363
        %1383 = vmatpush.bf16.msra.mxu0 %v1362
        %1384 = vmatpush.bf16.msra.mxu0 %v1361
        %1385 = vmatmul.bf16.gmra.mxu0 %v1311
        %v1386 = vpop.f32.mrf.mxu0
        %v1387 = vadd.f32 %v1328, %v1386
        %v1388 = vpop.f32.mrf.mxu0
        %1389 = vdwg.mxu0
        %v1390 = vadd.f32 %v1246, %v1387
        %1391 = vst.msk [vmem:[%s390] sm:$0xff] %vm737, %v1390
        %s1392 = sand.u32 %s248, 1
        %s1393 = scalar_lea.sflag [#allocation6], %s1392
        %s1394 = sand.u32 %s248, 1
        %s1395 = smul.addr %s1394, 8
        %s1396 = scalar_lea.vmem [#allocation9], %s1395
        // Predicated region
        $region69: #{tpu_custom_call.1} parent=55 // pred_check
          %p1397 = pneg %p258
        $region70: #{tpu_custom_call.1} parent=55 // pred_check_branch
          %1399 = sbr.rel (%p1397) target = $region72
        $region71: #{tpu_custom_call.1} parent=55 // pred_region
          %1401 = vsyncadd %s1393, 0
          %s1402 = sadd.s32 %s30, %s29
          %s1403 = smul.addr %s1402, 8
          %s1404 = scalar_lea.hbm %s9, %s1403
          %s1406 = sshll.u32 %s1396, 4
          %s1407 = int_to_ptr.vmem [resolvable:$true] %s1406
          %s1408 = sshll.u32 %s1404, 4
          %s1409 = int_to_ptr.hbm [resolvable:$true] %s1408
          %1411 = dma.vmem_to_hbm [thread:$0]  %s1407, 128, %s1409, %s1393
        $region72: #{tpu_custom_call.1} parent=55 // pred_fallthru
          _
      $region56: #{tpu_custom_call.1} parent=5 // pred_fallthru
        _
      %p1412 = scmp.le.s32.totalorder 2, %s20
      // Predicated region
      $region73: #{tpu_custom_call.1} parent=5 // pred_check
        %p1413 = pneg %p1412
      $region74: #{tpu_custom_call.1} parent=5 // pred_check_branch
        %1415 = sbr.rel (%p1413) target = $region76
      $region75: #{tpu_custom_call.1} parent=5 // pred_region
        %s1416 = ssub.s32 %s20, 2
        // Predicated region
        $region77: #{tpu_custom_call.1} parent=75 // pred_check
          %p1417 = pneg %p264
        $region78: #{tpu_custom_call.1} parent=75 // pred_check_branch
          %1419 = sbr.rel (%p1417) target = $region80
        $region79: #{tpu_custom_call.1} parent=75 // pred_region
          %s1420 = sand.u32 %s249, 1
          %s1421 = scalar_lea.sflag [#allocation6], %s1420
          %s1422 = sand.u32 %s249, 1
          %s1423 = smul.addr %s1422, 8
          %s1424 = scalar_lea.vmem [#allocation9], %s1423
          %1426 = dma.done %s1421, 128
        $region80: #{tpu_custom_call.1} parent=75 // pred_fallthru
          _
      $region76: #{tpu_custom_call.1} parent=5 // pred_fallthru
        _
    $region6: #{tpu_custom_call.1} parent=1 // loop_footer
      %s24 = sadd.s32 1, %s20
    $region7: #{tpu_custom_call.1} parent=1 // loop_footer_branch
      %19 = sbr.rel target = $region3
    $region8: #{tpu_custom_call.1} parent=1 // loop_exit
      _
    %1427 = vsyncpa [#allocation5], 1
    %s1428 = scalar_lea.sflag [#allocation5], 1
    %1429 = vsyncpa %s1428, 1
    %1430 = vsyncpa [#allocation8], 1
    %1431 = vsyncpa [#allocation6], 1
    %s1432 = scalar_lea.sflag [#allocation6], 1
    %1433 = vsyncpa %s1432, 1

</llo_original>
